<compile_context>
chip_gen: v7x
topology: tpu7x:2x2x1
jax: 0.10.0
libtpu: 0.0.40
codegen_flags: <defaults>
</compile_context>

<pallas_src>
import math

import jax
import jax.numpy as jnp
from jax.experimental import pallas as pl
from jax.experimental.pallas import tpu as pltpu


def _round_up(x, m):
    return (x + m - 1) // m * m


def _ltvae_fwd_kernel(
    x_ref,
    we_ref, be_ref,
    wml_ref, bml_ref,     # fused (mu | logvar) projection, lane-padded to ML_PAD
    wd_ref, bd_ref,       # decoder input weight, row-padded to ML_PAD (rows >= z_dim are 0)
    wdec_ref, bdec_ref,
    muls_ref, xrec_ref,
):
    cdt = we_ref.dtype  # compute dtype for MXU operands (bf16)

    # encoder: Linear(input_dim -> H) + ReLU   (bf16 operands, f32 accumulation)
    h = jnp.dot(x_ref[...], we_ref[...], preferred_element_type=jnp.float32) + be_ref[...]
    h = jnp.maximum(h, 0.0)
    h_b = h.astype(cdt)

    # fused _enc_mu | _enc_log_sigma : Linear(H -> 2*z_dim), lane-padded to 128.
    # Single MXU push + one lane-dense 128-wide store instead of two masked stores.
    muls = jnp.dot(h_b, wml_ref[...], preferred_element_type=jnp.float32) + bml_ref[...]
    muls_ref[...] = muls

    # reparameterize (eval mode): z = mu = muls[:, :z_dim].
    # Instead of slicing lanes, feed the whole padded block into a decoder weight
    # whose rows >= z_dim are zero — mathematically identical, MXU-friendly K=128.
    z_b = muls.astype(cdt)

    # decoder: Linear(z_dim -> H) + ReLU
    h2 = jnp.dot(z_b, wd_ref[...], preferred_element_type=jnp.float32) + bd_ref[...]
    h2 = jnp.maximum(h2, 0.0)
    h2_b = h2.astype(cdt)

    # _dec: Linear(H -> input_dim), _dec_act: Sigmoid (binary=True)
    logits = jnp.dot(h2_b, wdec_ref[...], preferred_element_type=jnp.float32) + bdec_ref[...]
    xrec_ref[...] = jax.nn.sigmoid(logits)


def ltvae_forward(x, params, *, batch_tile=256, compute_dtype=jnp.bfloat16):
    """Fused LTVAE forward (eval mode).

    x: [B, input_dim] float32
    params: dict of pre-transposed weights ([in, out]) and biases ([1, out]) in f32.
    Returns (z, recon_x, mu, logvar), all float32, matching the PyTorch forward().
    """
    B, input_dim = x.shape
    H = params["we"].shape[1]
    z_dim = params["wmu"].shape[1]
    ml_pad = _round_up(max(2 * z_dim, 128), 128)   # lane-dense packed mu|logvar width

    # --- tile selection: MXU-aligned, keep >= 2 grid steps when B allows (v7x 2 TCs) ---
    bt = max(8, (min(batch_tile, 512) // 8) * 8)
    while bt > 8 and _round_up(B, bt) // bt < 2:
        bt = max(8, (bt // 2 // 8) * 8)
    Bp = _round_up(B, bt)
    if Bp != B:
        x = jnp.pad(x, ((0, Bp - B), (0, 0)))
    grid = (Bp // bt,)

    # --- pack / downcast parameters (bf16 operands, f32 biases) ---
    itemsize_c = jnp.dtype(compute_dtype).itemsize
    xc = x.astype(compute_dtype)
    we = params["we"].astype(compute_dtype)
    be = params["be"].astype(jnp.float32)

    wml = jnp.zeros((H, ml_pad), compute_dtype)
    wml = wml.at[:, :z_dim].set(params["wmu"].astype(compute_dtype))
    wml = wml.at[:, z_dim:2 * z_dim].set(params["wls"].astype(compute_dtype))
    bml = jnp.zeros((1, ml_pad), jnp.float32)
    bml = bml.at[:, :z_dim].set(params["bmu"].astype(jnp.float32))
    bml = bml.at[:, z_dim:2 * z_dim].set(params["bls"].astype(jnp.float32))

    wd = jnp.zeros((ml_pad, H), compute_dtype)
    wd = wd.at[:z_dim, :].set(params["wd"].astype(compute_dtype))
    bd = params["bd"].astype(jnp.float32)
    wdec = params["wdec"].astype(compute_dtype)
    bdec = params["bdec"].astype(jnp.float32)

    weights = (we, be, wml, bml, wd, bd, wdec, bdec)
    weight_bytes = int(sum(int(a.size) * a.dtype.itemsize for a in weights))

    # --- specs ---
    def batch_spec(ncols):
        return pl.BlockSpec((bt, ncols), lambda i: (i, 0))

    def full_spec(a):
        # Constant index_map: block index never changes, so Pallas keeps the
        # weight resident in VMEM instead of re-DMA'ing it every grid step.
        return pl.BlockSpec(a.shape, lambda i: (0, 0))

    in_specs = [batch_spec(input_dim)] + [full_spec(a) for a in weights]
    out_specs = (
        batch_spec(ml_pad),     # packed (mu | logvar | pad) — lane-dense 128-wide store
        batch_spec(input_dim),  # recon_x
    )
    out_shape = (
        jax.ShapeDtypeStruct((Bp, ml_pad), jnp.float32),
        jax.ShapeDtypeStruct((Bp, input_dim), jnp.float32),
    )

    # --- cost estimate (helps XLA schedule the custom call inside larger graphs) ---
    flops = int(2 * Bp * (input_dim * H + H * ml_pad + ml_pad * H + H * input_dim))
    bytes_accessed = int(
        Bp * input_dim * itemsize_c          # x
        + weight_bytes                        # weights + biases (read once)
        + Bp * ml_pad * 4 + Bp * input_dim * 4  # outputs
    )
    cost = pl.CostEstimate(
        flops=flops,
        transcendentals=int(Bp * input_dim),  # sigmoid
        bytes_accessed=bytes_accessed,
    )

    # --- VMEM budget: only raise the scoped limit if this config actually needs it ---
    tile_bytes = bt * input_dim * itemsize_c + bt * ml_pad * 4 + bt * input_dim * 4
    vmem_est = 2 * weight_bytes + 2 * tile_bytes  # worst case: everything double-buffered
    compiler_kwargs = dict(dimension_semantics=("parallel",))
    if vmem_est > 32 * 1024 * 1024:
        compiler_kwargs["vmem_limit_bytes"] = int(min(vmem_est * 5 // 4, 96 * 1024 * 1024))

    muls, xrec = pl.pallas_call(
        _ltvae_fwd_kernel,
        out_shape=out_shape,
        grid_spec=pltpu.PrefetchScalarGridSpec(
            num_scalar_prefetch=0,
            grid=grid,
            in_specs=in_specs,
            out_specs=out_specs,
        ),
        compiler_params=pltpu.CompilerParams(**compiler_kwargs),
        cost_estimate=cost,
    )(xc, *weights)

    muls = muls[:B]
    xrec = xrec[:B]
    mu = muls[:, :z_dim]
    logvar = muls[:, z_dim:2 * z_dim]
    z = mu  # eval-mode reparameterize
    return z, xrec, mu, logvar


def init_params(key, input_dim, hidden, z_dim):
    """Deterministic init matching PyTorch nn.Linear default:
    U(-1/sqrt(fan_in), 1/sqrt(fan_in)). Weights stored as [in, out]."""
    def linear(k, fan_in, fan_out):
        kw, kb = jax.random.split(k)
        bound = 1.0 / math.sqrt(fan_in)
        w = jax.random.uniform(kw, (fan_in, fan_out), jnp.float32, -bound, bound)
        b = jax.random.uniform(kb, (1, fan_out), jnp.float32, -bound, bound)
        return w, b

    k = jax.random.split(key, 5)
    we, be = linear(k[0], input_dim, hidden)      # encoder[0]
    wmu, bmu = linear(k[1], hidden, z_dim)        # _enc_mu
    wls, bls = linear(k[2], hidden, z_dim)        # _enc_log_sigma
    wd, bd = linear(k[3], z_dim, hidden)          # decoder[0]
    wdec, bdec = linear(k[4], hidden, input_dim)  # _dec
    return dict(we=we, be=be, wmu=wmu, bmu=bmu, wls=wls, bls=bls,
                wd=wd, bd=bd, wdec=wdec, bdec=bdec)


if __name__ == "__main__":
    # Shapes consistent with LTVAE(input_dim, z_dim=10, encodeLayer=[H], decodeLayer=[H]).
    # B=512 with batch_tile=256 gives a 2-step grid (both v7x TensorCores busy).
    B, INPUT_DIM, HIDDEN, Z_DIM = 512, 256, 256, 10
    CDT = jnp.bfloat16

    key = jax.random.PRNGKey(0)
    k_params, k_x = jax.random.split(key)
    params = init_params(k_params, INPUT_DIM, HIDDEN, Z_DIM)
    # binary VAE: inputs in [0, 1]
    x = jax.random.uniform(k_x, (B, INPUT_DIM), jnp.float32)

    z, recon, mu, logvar = ltvae_forward(x, params, batch_tile=256, compute_dtype=CDT)
    jax.block_until_ready((z, recon, mu, logvar))

    # Plain-JAX reference of the same mixed-precision forward pass
    # (bf16 operands, f32 accumulation), mirroring the kernel exactly.
    xb = x.astype(CDT)
    h = jnp.maximum(
        jnp.dot(xb, params["we"].astype(CDT), preferred_element_type=jnp.float32)
        + params["be"], 0.0)
    h_b = h.astype(CDT)
    mu_ref = jnp.dot(h_b, params["wmu"].astype(CDT),
                     preferred_element_type=jnp.float32) + params["bmu"]
    logvar_ref = jnp.dot(h_b, params["wls"].astype(CDT),
                         preferred_element_type=jnp.float32) + params["bls"]
    z_ref = mu_ref
    z_b = z_ref.astype(CDT)
    h2 = jnp.maximum(
        jnp.dot(z_b, params["wd"].astype(CDT), preferred_element_type=jnp.float32)
        + params["bd"], 0.0)
    h2_b = h2.astype(CDT)
    recon_ref = jax.nn.sigmoid(
        jnp.dot(h2_b, params["wdec"].astype(CDT), preferred_element_type=jnp.float32)
        + params["bdec"])

    assert z.shape == (B, Z_DIM) and mu.shape == (B, Z_DIM)
    assert logvar.shape == (B, Z_DIM) and recon.shape == (B, INPUT_DIM)
    assert jnp.allclose(z, z_ref, atol=1e-3, rtol=1e-3)
    assert jnp.allclose(mu, mu_ref, atol=1e-3, rtol=1e-3)
    assert jnp.allclose(logvar, logvar_ref, atol=1e-3, rtol=1e-3)
    assert jnp.allclose(recon, recon_ref, atol=1e-3, rtol=1e-3)

    print("KERNEL_OK")
</pallas_src>

<mosaic_0001>
module attributes {stable_mosaic.version = 11 : i64} {
  func.func @_ltvae_fwd_kernel(%arg0: i32, %arg1: memref<256x256xbf16, #tpu.memory_space<vmem>>, %arg2: memref<256x256xbf16, #tpu.memory_space<vmem>>, %arg3: memref<1x256xf32, #tpu.memory_space<vmem>>, %arg4: memref<256x128xbf16, #tpu.memory_space<vmem>>, %arg5: memref<1x128xf32, #tpu.memory_space<vmem>>, %arg6: memref<128x256xbf16, #tpu.memory_space<vmem>>, %arg7: memref<1x256xf32, #tpu.memory_space<vmem>>, %arg8: memref<256x256xbf16, #tpu.memory_space<vmem>>, %arg9: memref<1x256xf32, #tpu.memory_space<vmem>>, %arg10: memref<256x128xf32, #tpu.memory_space<vmem>>, %arg11: memref<256x256xf32, #tpu.memory_space<vmem>>) attributes {dimension_semantics = [#tpu.dimension_semantics<parallel>], iteration_bounds = array<i64: 2>, scalar_prefetch = 0 : i64, scratch_operands = 0 : i64, tpu.core_type = #tpu.core_type<tc>, window_params = [{transform_indices = @transform_0, window_bounds = array<i64: 256, 256>}, {pipeline_mode = #tpu.pipeline_mode<synchronous>, transform_indices = @transform_1, window_bounds = array<i64: 256, 256>}, {pipeline_mode = #tpu.pipeline_mode<synchronous>, transform_indices = @transform_2, window_bounds = array<i64: 1, 256>}, {pipeline_mode = #tpu.pipeline_mode<synchronous>, transform_indices = @transform_3, window_bounds = array<i64: 256, 128>}, {pipeline_mode = #tpu.pipeline_mode<synchronous>, transform_indices = @transform_4, window_bounds = array<i64: 1, 128>}, {pipeline_mode = #tpu.pipeline_mode<synchronous>, transform_indices = @transform_5, window_bounds = array<i64: 128, 256>}, {pipeline_mode = #tpu.pipeline_mode<synchronous>, transform_indices = @transform_6, window_bounds = array<i64: 1, 256>}, {pipeline_mode = #tpu.pipeline_mode<synchronous>, transform_indices = @transform_7, window_bounds = array<i64: 256, 256>}, {pipeline_mode = #tpu.pipeline_mode<synchronous>, transform_indices = @transform_8, window_bounds = array<i64: 1, 256>}, {transform_indices = @transform_9, window_bounds = array<i64: 256, 128>}, {transform_indices = @transform_10, window_bounds = array<i64: 256, 256>}]} {
    %c0 = arith.constant 0 : index
    %c0_0 = arith.constant 0 : index
    %0 = vector.load %arg1[%c0, %c0_0] : memref<256x256xbf16, #tpu.memory_space<vmem>>, vector<256x256xbf16>
    %c0_1 = arith.constant 0 : index
    %c0_2 = arith.constant 0 : index
    %1 = vector.load %arg2[%c0_1, %c0_2] : memref<256x256xbf16, #tpu.memory_space<vmem>>, vector<256x256xbf16>
    %cst = arith.constant dense<0.000000e+00> : vector<256x256xf32>
    %2 = tpu.matmul %0, %1, %cst {dimension_numbers = #tpu.dot_dimension_numbers<[1], [0], [0], [1], [0, 0, 1, 1], [], []>} : vector<256x256xbf16>, vector<256x256xbf16>, vector<256x256xf32> -> vector<256x256xf32>
    %c0_3 = arith.constant 0 : index
    %c0_4 = arith.constant 0 : index
    %3 = vector.load %arg3[%c0_3, %c0_4] : memref<1x256xf32, #tpu.memory_space<vmem>>, vector<1x256xf32>
    %4 = vector.broadcast %3 : vector<1x256xf32> to vector<256x256xf32>
    %5 = arith.addf %2, %4 : vector<256x256xf32>
    %cst_5 = arith.constant 0.000000e+00 : f32
    %6 = vector.broadcast %cst_5 : f32 to vector<256x256xf32>
    %7 = arith.maximumf %5, %6 : vector<256x256xf32>
    %8 = arith.truncf %7 : vector<256x256xf32> to vector<256x256xbf16>
    %c0_6 = arith.constant 0 : index
    %c0_7 = arith.constant 0 : index
    %9 = vector.load %arg4[%c0_6, %c0_7] : memref<256x128xbf16, #tpu.memory_space<vmem>>, vector<256x128xbf16>
    %cst_8 = arith.constant dense<0.000000e+00> : vector<256x128xf32>
    %10 = tpu.matmul %8, %9, %cst_8 {dimension_numbers = #tpu.dot_dimension_numbers<[1], [0], [0], [1], [0, 0, 1, 1], [], []>} : vector<256x256xbf16>, vector<256x128xbf16>, vector<256x128xf32> -> vector<256x128xf32>
    %c0_9 = arith.constant 0 : index
    %c0_10 = arith.constant 0 : index
    %11 = vector.load %arg5[%c0_9, %c0_10] : memref<1x128xf32, #tpu.memory_space<vmem>>, vector<1x128xf32>
    %12 = vector.broadcast %11 : vector<1x128xf32> to vector<256x128xf32>
    %13 = arith.addf %10, %12 : vector<256x128xf32>
    %c0_11 = arith.constant 0 : index
    %c0_12 = arith.constant 0 : index
    %14 = vector.load %arg10[%c0_11, %c0_12] : memref<256x128xf32, #tpu.memory_space<vmem>>, vector<256x128xf32>
    tpu.vector_store %arg10[%c0_11, %c0_12], %13 {strides = array<i32>} : memref<256x128xf32, #tpu.memory_space<vmem>>, vector<256x128xf32>,
    %15 = arith.truncf %13 : vector<256x128xf32> to vector<256x128xbf16>
    %c0_13 = arith.constant 0 : index
    %c0_14 = arith.constant 0 : index
    %16 = vector.load %arg6[%c0_13, %c0_14] : memref<128x256xbf16, #tpu.memory_space<vmem>>, vector<128x256xbf16>
    %cst_15 = arith.constant dense<0.000000e+00> : vector<256x256xf32>
    %17 = tpu.matmul %15, %16, %cst_15 {dimension_numbers = #tpu.dot_dimension_numbers<[1], [0], [0], [1], [0, 0, 1, 1], [], []>} : vector<256x128xbf16>, vector<128x256xbf16>, vector<256x256xf32> -> vector<256x256xf32>
    %c0_16 = arith.constant 0 : index
    %c0_17 = arith.constant 0 : index
    %18 = vector.load %arg7[%c0_16, %c0_17] : memref<1x256xf32, #tpu.memory_space<vmem>>, vector<1x256xf32>
    %19 = vector.broadcast %18 : vector<1x256xf32> to vector<256x256xf32>
    %20 = arith.addf %17, %19 : vector<256x256xf32>
    %cst_18 = arith.constant 0.000000e+00 : f32
    %21 = vector.broadcast %cst_18 : f32 to vector<256x256xf32>
    %22 = arith.maximumf %20, %21 : vector<256x256xf32>
    %23 = arith.truncf %22 : vector<256x256xf32> to vector<256x256xbf16>
    %c0_19 = arith.constant 0 : index
    %c0_20 = arith.constant 0 : index
    %24 = vector.load %arg8[%c0_19, %c0_20] : memref<256x256xbf16, #tpu.memory_space<vmem>>, vector<256x256xbf16>
    %cst_21 = arith.constant dense<0.000000e+00> : vector<256x256xf32>
    %25 = tpu.matmul %23, %24, %cst_21 {dimension_numbers = #tpu.dot_dimension_numbers<[1], [0], [0], [1], [0, 0, 1, 1], [], []>} : vector<256x256xbf16>, vector<256x256xbf16>, vector<256x256xf32> -> vector<256x256xf32>
    %c0_22 = arith.constant 0 : index
    %c0_23 = arith.constant 0 : index
    %26 = vector.load %arg9[%c0_22, %c0_23] : memref<1x256xf32, #tpu.memory_space<vmem>>, vector<1x256xf32>
    %27 = vector.broadcast %26 : vector<1x256xf32> to vector<256x256xf32>
    %28 = arith.addf %25, %27 : vector<256x256xf32>
    %29 = arith.negf %28 : vector<256x256xf32>
    %30 = math.exp %29 : vector<256x256xf32>
    %cst_24 = arith.constant 1.000000e+00 : f32
    %31 = vector.broadcast %cst_24 : f32 to vector<256x256xf32>
    %32 = arith.addf %31, %30 : vector<256x256xf32>
    %33 = arith.divf %31, %32 : vector<256x256xf32>
    %c0_25 = arith.constant 0 : index
    %c0_26 = arith.constant 0 : index
    %34 = vector.load %arg11[%c0_25, %c0_26] : memref<256x256xf32, #tpu.memory_space<vmem>>, vector<256x256xf32>
    tpu.vector_store %arg11[%c0_25, %c0_26], %33 {strides = array<i32>} : memref<256x256xf32, #tpu.memory_space<vmem>>, vector<256x256xf32>,
    return
  }
  func.func @transform_0(%arg0: i32) -> (i32, i32) {
    %c0_i32 = arith.constant 0 : i32
    %c0_i32_0 = arith.constant 0 : i32
    return %arg0, %c0_i32 : i32, i32
  }
  func.func @transform_1(%arg0: i32) -> (i32, i32) {
    %c0_i32 = arith.constant 0 : i32
    %c0_i32_0 = arith.constant 0 : i32
    %c0_i32_1 = arith.constant 0 : i32
    return %c0_i32, %c0_i32_0 : i32, i32
  }
  func.func @transform_2(%arg0: i32) -> (i32, i32) {
    %c0_i32 = arith.constant 0 : i32
    %c0_i32_0 = arith.constant 0 : i32
    %c0_i32_1 = arith.constant 0 : i32
    return %c0_i32, %c0_i32_0 : i32, i32
  }
  func.func @transform_3(%arg0: i32) -> (i32, i32) {
    %c0_i32 = arith.constant 0 : i32
    %c0_i32_0 = arith.constant 0 : i32
    %c0_i32_1 = arith.constant 0 : i32
    return %c0_i32, %c0_i32_0 : i32, i32
  }
  func.func @transform_4(%arg0: i32) -> (i32, i32) {
    %c0_i32 = arith.constant 0 : i32
    %c0_i32_0 = arith.constant 0 : i32
    %c0_i32_1 = arith.constant 0 : i32
    return %c0_i32, %c0_i32_0 : i32, i32
  }
  func.func @transform_5(%arg0: i32) -> (i32, i32) {
    %c0_i32 = arith.constant 0 : i32
    %c0_i32_0 = arith.constant 0 : i32
    %c0_i32_1 = arith.constant 0 : i32
    return %c0_i32, %c0_i32_0 : i32, i32
  }
  func.func @transform_6(%arg0: i32) -> (i32, i32) {
    %c0_i32 = arith.constant 0 : i32
    %c0_i32_0 = arith.constant 0 : i32
    %c0_i32_1 = arith.constant 0 : i32
    return %c0_i32, %c0_i32_0 : i32, i32
  }
  func.func @transform_7(%arg0: i32) -> (i32, i32) {
    %c0_i32 = arith.constant 0 : i32
    %c0_i32_0 = arith.constant 0 : i32
    %c0_i32_1 = arith.constant 0 : i32
    return %c0_i32, %c0_i32_0 : i32, i32
  }
  func.func @transform_8(%arg0: i32) -> (i32, i32) {
    %c0_i32 = arith.constant 0 : i32
    %c0_i32_0 = arith.constant 0 : i32
    %c0_i32_1 = arith.constant 0 : i32
    return %c0_i32, %c0_i32_0 : i32, i32
  }
  func.func @transform_9(%arg0: i32) -> (i32, i32) {
    %c0_i32 = arith.constant 0 : i32
    %c0_i32_0 = arith.constant 0 : i32
    return %arg0, %c0_i32 : i32, i32
  }
  func.func @transform_10(%arg0: i32) -> (i32, i32) {
    %c0_i32 = arith.constant 0 : i32
    %c0_i32_0 = arith.constant 0 : i32
    return %arg0, %c0_i32 : i32, i32
  }
}

</mosaic_0001>

<llo_original>
// kernel: tpu_custom_call.1
$region0: #{tpu_custom_call.1}
  #allocation0 [shape = 'u32[]', space=smem, size = 0x4, offset = 0x4, fixed_abs, tag = 'smem constant byte address 0x4 - core index']
  #allocation1 [shape = 'u32[144,128]{1,0:T(1,128)}', space=vmem, size = 0x12000, scoped, tag = 'internal scratch']
  %s0 = inlined_call_operand.hbm [shape: bf16[512,256], index: 0, kind: input, shape index: {}]
  %s1 = inlined_call_operand.hbm [shape: bf16[256,256], index: 1, kind: input, shape index: {}]
  %s2 = inlined_call_operand.vmem [shape: f32[1,256], index: 2, kind: input, shape index: {}]
  %s3 = inlined_call_operand.hbm [shape: bf16[256,128], index: 3, kind: input, shape index: {}]
  %s4 = inlined_call_operand.vmem [shape: f32[1,128], index: 4, kind: input, shape index: {}]
  %s5 = inlined_call_operand.hbm [shape: bf16[128,256], index: 5, kind: input, shape index: {}]
  %s6 = inlined_call_operand.vmem [shape: f32[1,256], index: 6, kind: input, shape index: {}]
  %s7 = inlined_call_operand.hbm [shape: bf16[256,256], index: 7, kind: input, shape index: {}]
  %s8 = inlined_call_operand.vmem [shape: f32[1,256], index: 8, kind: input, shape index: {}]
  %s9 = inlined_call_operand.hbm [shape: f32[512,128], index: 9, kind: output, shape index: {0}]
  %s10 = inlined_call_operand.hbm [shape: f32[512,256], index: 10, kind: output, shape index: {1}]
  %11 = xla_tuple %s9, %s10
  %s12 = sld [smem:[#allocation0]]
  $region97: #{tpu_custom_call.1} parent=0
    _
  %s14 = ssub.s32 1, %s12
  %s15 = scalar_select 0, %s14, %s12
  $region1: #{tpu_custom_call.1} parent=0
    #allocation2 [shape = 'u8[262144]{0}', space=vmem, size = 0x40000, scoped, tag = 'input window, operand 0']
    #allocation3 [shape = 's32[2]{0}', space=sflag, size = 0x8, scoped, tag = 'scoped memory for tpu_custom_call.1']
    #allocation4 [shape = 's32[2]{0}', space=sflag, size = 0x8, scoped, tag = 'scoped memory for tpu_custom_call.1']
    #allocation5 [shape = 'u8[131072]{0}', space=vmem, size = 0x20000, scoped, tag = 'input window, operand 1, single buffered']
    #allocation6 [shape = 's32[1]{0}', space=sflag, size = 0x4, scoped, tag = 'scoped memory for tpu_custom_call.1']
    #allocation7 [shape = 'u8[65536]{0}', space=vmem, size = 0x10000, scoped, tag = 'input window, operand 3, single buffered']
    #allocation8 [shape = 'u8[65536]{0}', space=vmem, size = 0x10000, scoped, tag = 'input window, operand 5, single buffered']
    #allocation9 [shape = 's32[1]{0}', space=sflag, size = 0x4, scoped, tag = 'scoped memory for tpu_custom_call.1']
    #allocation10 [shape = 'u8[131072]{0}', space=vmem, size = 0x20000, scoped, tag = 'input window, operand 7, single buffered']
    #allocation11 [shape = 'u8[262144]{0}', space=vmem, size = 0x40000, scoped, tag = 'output window, operand 0']
    #allocation12 [shape = 'u8[524288]{0}', space=vmem, size = 0x80000, scoped, tag = 'output window, operand 1']
    #allocation13 [shape = 's32[2]{0}', space=sflag, size = 0x8, scoped, tag = 'scoped memory for tpu_custom_call.1']
    %16 = vsyncpa [#allocation3], 0
    %s17 = scalar_lea.sflag [#allocation3], 1
    %18 = vsyncpa %s17, 0
    %19 = vsyncpa [#allocation6], 0
    %20 = vsyncpa [#allocation9], 0
    %21 = vsyncpa [#allocation4], 0
    %s22 = scalar_lea.sflag [#allocation4], 1
    %23 = vsyncpa %s22, 0
    %24 = vsyncpa [#allocation13], 0
    %s25 = scalar_lea.sflag [#allocation13], 1
    %26 = vsyncpa %s25, 0
    loop: start=0, step=1, limit=4
    $region2: #{tpu_custom_call.1} parent=1 // loop_pre_header
      _
    $region3: #{tpu_custom_call.1} parent=1 // loop_header
      %s28 = sphi 0, %s32
      %p29 = scmp.ge.s32.totalorder %s28, 4
      %s38 = sphi 0, %s40
      %s41 = sphi 0, %s38
      %s42 = sphi 0, %s41
      %s58 = sphi 0, %s42
      %s62 = sphi 0, %s62
      %s64 = sphi 0, %s62
      %s65 = sphi 0, %s64
      %s79 = sphi 0, %s65
      %s83 = sphi 0, %s83
      %s85 = sphi 0, %s83
      %s86 = sphi 0, %s85
      %s100 = sphi 0, %s86
      %s104 = sphi 0, %s104
      %s106 = sphi 0, %s104
      %s107 = sphi 0, %s106
      %s121 = sphi 0, %s107
      %s125 = sphi 0, %s125
      %s127 = sphi 0, %s125
      %s128 = sphi 0, %s127
      %s142 = sphi 0, %s128
      %s146 = sphi 0, %s146
      %s148 = sphi 0, %s146
      %s149 = sphi 0, %s148
      %s163 = sphi 0, %s149
      %s167 = sphi 0, %s167
      %s169 = sphi 0, %s167
      %s170 = sphi 0, %s169
      %s184 = sphi 0, %s170
      %s188 = sphi 0, %s188
      %s190 = sphi 0, %s188
      %s191 = sphi 0, %s190
      %s205 = sphi 0, %s191
      %s209 = sphi 0, %s209
      %s211 = sphi 0, %s209
      %s212 = sphi 0, %s211
      %s226 = sphi 0, %s212
      %s232 = sphi 0, %s234
      %s235 = sphi 0, %s232
      %s236 = sphi 0, %s235
      %s252 = sphi 0, %s236
      %s258 = sphi 0, %s260
      %s261 = sphi 0, %s258
      %s262 = sphi 0, %s261
      %s278 = sphi 0, %s262
    $region4: #{tpu_custom_call.1} parent=1 // loop_header_branch
      %31 = sbr.rel (%p29) target = $region8
    $region5: #{tpu_custom_call.1} parent=1 // loop_body
      %s33 = ssub.s32 %s28, 1
      %s34 = ssub.s32 %s28, 2
      %s35 = sadd.s32 %s28, 1
      %s36 = ssub.s32 %s28, %s35
      %p37 = scmp.eq.s32.totalorder %s36, 0
      %s39 = sadd.s32 %s38, 1
      %s40 = scalar_select %p37, %s38, %s39
      %p43 = pneg %p37
      %p44 = scmp.eq.s32.totalorder %s28, 1
      %p45 = por %p43, %p44
      %p46 = scmp.ne.s32.totalorder %s38, %s41
      %p47 = scmp.eq.s32.totalorder %s28, 0
      %p48 = por %p46, %p47
      %p49 = scmp.ne.s32.totalorder %s38, %s41
      %p50 = scmp.eq.s32.totalorder %s33, 1
      %p51 = por %p49, %p50
      %p52 = scmp.ne.s32.totalorder %s41, %s42
      %p53 = scmp.eq.s32.totalorder %s33, 0
      %p54 = por %p52, %p53
      %p55 = scmp.ne.s32.totalorder %s41, %s42
      %p56 = scmp.eq.s32.totalorder %s34, 1
      %p57 = por %p55, %p56
      %p59 = scmp.ne.s32.totalorder %s42, %s58
      %p60 = scmp.eq.s32.totalorder %s34, 0
      %p61 = por %p59, %p60
      %s63 = sadd.s32 %s62, 1
      %p66 = scmp.eq.s32.totalorder %s28, 1
      %p67 = scmp.ne.s32.totalorder %s62, %s64
      %p68 = scmp.eq.s32.totalorder %s28, 0
      %p69 = por %p67, %p68
      %p70 = scmp.ne.s32.totalorder %s62, %s64
      %p71 = scmp.eq.s32.totalorder %s33, 1
      %p72 = por %p70, %p71
      %p73 = scmp.ne.s32.totalorder %s64, %s65
      %p74 = scmp.eq.s32.totalorder %s33, 0
      %p75 = por %p73, %p74
      %p76 = scmp.ne.s32.totalorder %s64, %s65
      %p77 = scmp.eq.s32.totalorder %s34, 1
      %p78 = por %p76, %p77
      %p80 = scmp.ne.s32.totalorder %s65, %s79
      %p81 = scmp.eq.s32.totalorder %s34, 0
      %p82 = por %p80, %p81
      %s84 = sadd.s32 %s83, 1
      %p87 = scmp.eq.s32.totalorder %s28, 1
      %p88 = scmp.ne.s32.totalorder %s83, %s85
      %p89 = scmp.eq.s32.totalorder %s28, 0
      %p90 = por %p88, %p89
      %p91 = scmp.ne.s32.totalorder %s83, %s85
      %p92 = scmp.eq.s32.totalorder %s33, 1
      %p93 = por %p91, %p92
      %p94 = scmp.ne.s32.totalorder %s85, %s86
      %p95 = scmp.eq.s32.totalorder %s33, 0
      %p96 = por %p94, %p95
      %p97 = scmp.ne.s32.totalorder %s85, %s86
      %p98 = scmp.eq.s32.totalorder %s34, 1
      %p99 = por %p97, %p98
      %p101 = scmp.ne.s32.totalorder %s86, %s100
      %p102 = scmp.eq.s32.totalorder %s34, 0
      %p103 = por %p101, %p102
      %s105 = sadd.s32 %s104, 1
      %p108 = scmp.eq.s32.totalorder %s28, 1
      %p109 = scmp.ne.s32.totalorder %s104, %s106
      %p110 = scmp.eq.s32.totalorder %s28, 0
      %p111 = por %p109, %p110
      %p112 = scmp.ne.s32.totalorder %s104, %s106
      %p113 = scmp.eq.s32.totalorder %s33, 1
      %p114 = por %p112, %p113
      %p115 = scmp.ne.s32.totalorder %s106, %s107
      %p116 = scmp.eq.s32.totalorder %s33, 0
      %p117 = por %p115, %p116
      %p118 = scmp.ne.s32.totalorder %s106, %s107
      %p119 = scmp.eq.s32.totalorder %s34, 1
      %p120 = por %p118, %p119
      %p122 = scmp.ne.s32.totalorder %s107, %s121
      %p123 = scmp.eq.s32.totalorder %s34, 0
      %p124 = por %p122, %p123
      %s126 = sadd.s32 %s125, 1
      %p129 = scmp.eq.s32.totalorder %s28, 1
      %p130 = scmp.ne.s32.totalorder %s125, %s127
      %p131 = scmp.eq.s32.totalorder %s28, 0
      %p132 = por %p130, %p131
      %p133 = scmp.ne.s32.totalorder %s125, %s127
      %p134 = scmp.eq.s32.totalorder %s33, 1
      %p135 = por %p133, %p134
      %p136 = scmp.ne.s32.totalorder %s127, %s128
      %p137 = scmp.eq.s32.totalorder %s33, 0
      %p138 = por %p136, %p137
      %p139 = scmp.ne.s32.totalorder %s127, %s128
      %p140 = scmp.eq.s32.totalorder %s34, 1
      %p141 = por %p139, %p140
      %p143 = scmp.ne.s32.totalorder %s128, %s142
      %p144 = scmp.eq.s32.totalorder %s34, 0
      %p145 = por %p143, %p144
      %s147 = sadd.s32 %s146, 1
      %p150 = scmp.eq.s32.totalorder %s28, 1
      %p151 = scmp.ne.s32.totalorder %s146, %s148
      %p152 = scmp.eq.s32.totalorder %s28, 0
      %p153 = por %p151, %p152
      %p154 = scmp.ne.s32.totalorder %s146, %s148
      %p155 = scmp.eq.s32.totalorder %s33, 1
      %p156 = por %p154, %p155
      %p157 = scmp.ne.s32.totalorder %s148, %s149
      %p158 = scmp.eq.s32.totalorder %s33, 0
      %p159 = por %p157, %p158
      %p160 = scmp.ne.s32.totalorder %s148, %s149
      %p161 = scmp.eq.s32.totalorder %s34, 1
      %p162 = por %p160, %p161
      %p164 = scmp.ne.s32.totalorder %s149, %s163
      %p165 = scmp.eq.s32.totalorder %s34, 0
      %p166 = por %p164, %p165
      %s168 = sadd.s32 %s167, 1
      %p171 = scmp.eq.s32.totalorder %s28, 1
      %p172 = scmp.ne.s32.totalorder %s167, %s169
      %p173 = scmp.eq.s32.totalorder %s28, 0
      %p174 = por %p172, %p173
      %p175 = scmp.ne.s32.totalorder %s167, %s169
      %p176 = scmp.eq.s32.totalorder %s33, 1
      %p177 = por %p175, %p176
      %p178 = scmp.ne.s32.totalorder %s169, %s170
      %p179 = scmp.eq.s32.totalorder %s33, 0
      %p180 = por %p178, %p179
      %p181 = scmp.ne.s32.totalorder %s169, %s170
      %p182 = scmp.eq.s32.totalorder %s34, 1
      %p183 = por %p181, %p182
      %p185 = scmp.ne.s32.totalorder %s170, %s184
      %p186 = scmp.eq.s32.totalorder %s34, 0
      %p187 = por %p185, %p186
      %s189 = sadd.s32 %s188, 1
      %p192 = scmp.eq.s32.totalorder %s28, 1
      %p193 = scmp.ne.s32.totalorder %s188, %s190
      %p194 = scmp.eq.s32.totalorder %s28, 0
      %p195 = por %p193, %p194
      %p196 = scmp.ne.s32.totalorder %s188, %s190
      %p197 = scmp.eq.s32.totalorder %s33, 1
      %p198 = por %p196, %p197
      %p199 = scmp.ne.s32.totalorder %s190, %s191
      %p200 = scmp.eq.s32.totalorder %s33, 0
      %p201 = por %p199, %p200
      %p202 = scmp.ne.s32.totalorder %s190, %s191
      %p203 = scmp.eq.s32.totalorder %s34, 1
      %p204 = por %p202, %p203
      %p206 = scmp.ne.s32.totalorder %s191, %s205
      %p207 = scmp.eq.s32.totalorder %s34, 0
      %p208 = por %p206, %p207
      %s210 = sadd.s32 %s209, 1
      %p213 = scmp.eq.s32.totalorder %s28, 1
      %p214 = scmp.ne.s32.totalorder %s209, %s211
      %p215 = scmp.eq.s32.totalorder %s28, 0
      %p216 = por %p214, %p215
      %p217 = scmp.ne.s32.totalorder %s209, %s211
      %p218 = scmp.eq.s32.totalorder %s33, 1
      %p219 = por %p217, %p218
      %p220 = scmp.ne.s32.totalorder %s211, %s212
      %p221 = scmp.eq.s32.totalorder %s33, 0
      %p222 = por %p220, %p221
      %p223 = scmp.ne.s32.totalorder %s211, %s212
      %p224 = scmp.eq.s32.totalorder %s34, 1
      %p225 = por %p223, %p224
      %p227 = scmp.ne.s32.totalorder %s212, %s226
      %p228 = scmp.eq.s32.totalorder %s34, 0
      %p229 = por %p227, %p228
      %s230 = ssub.s32 %s28, %s35
      %p231 = scmp.eq.s32.totalorder %s230, 0
      %s233 = sadd.s32 %s232, 1
      %s234 = scalar_select %p231, %s232, %s233
      %p237 = pneg %p231
      %p238 = scmp.eq.s32.totalorder %s28, 1
      %p239 = por %p237, %p238
      %p240 = scmp.ne.s32.totalorder %s232, %s235
      %p241 = scmp.eq.s32.totalorder %s28, 0
      %p242 = por %p240, %p241
      %p243 = scmp.ne.s32.totalorder %s232, %s235
      %p244 = scmp.eq.s32.totalorder %s33, 1
      %p245 = por %p243, %p244
      %p246 = scmp.ne.s32.totalorder %s235, %s236
      %p247 = scmp.eq.s32.totalorder %s33, 0
      %p248 = por %p246, %p247
      %p249 = scmp.ne.s32.totalorder %s235, %s236
      %p250 = scmp.eq.s32.totalorder %s34, 1
      %p251 = por %p249, %p250
      %p253 = scmp.ne.s32.totalorder %s236, %s252
      %p254 = scmp.eq.s32.totalorder %s34, 0
      %p255 = por %p253, %p254
      %s256 = ssub.s32 %s28, %s35
      %p257 = scmp.eq.s32.totalorder %s256, 0
      %s259 = sadd.s32 %s258, 1
      %s260 = scalar_select %p257, %s258, %s259
      %p263 = pneg %p257
      %p264 = scmp.eq.s32.totalorder %s28, 1
      %p265 = por %p263, %p264
      %p266 = scmp.ne.s32.totalorder %s258, %s261
      %p267 = scmp.eq.s32.totalorder %s28, 0
      %p268 = por %p266, %p267
      %p269 = scmp.ne.s32.totalorder %s258, %s261
      %p270 = scmp.eq.s32.totalorder %s33, 1
      %p271 = por %p269, %p270
      %p272 = scmp.ne.s32.totalorder %s261, %s262
      %p273 = scmp.eq.s32.totalorder %s33, 0
      %p274 = por %p272, %p273
      %p275 = scmp.ne.s32.totalorder %s261, %s262
      %p276 = scmp.eq.s32.totalorder %s34, 1
      %p277 = por %p275, %p276
      %p279 = scmp.ne.s32.totalorder %s262, %s278
      %p280 = scmp.eq.s32.totalorder %s34, 0
      %p281 = por %p279, %p280
      %p282 = scmp.le.s32.totalorder 1, %s28
      %p283 = scmp.lt.s32.totalorder %s28, 3
      %p284 = pnand %p282, %p283
      %p285 = pneg %p284
      // Predicated region
      $region9: #{tpu_custom_call.1} parent=5 // pred_check
        _
      $region10: #{tpu_custom_call.1} parent=5 // pred_check_branch
        %287 = sbr.rel (%p284) target = $region12
      $region11: #{tpu_custom_call.1} parent=5 // pred_region
        %s288 = ssub.s32 %s28, 1
        // Predicated region
        $region13: #{tpu_custom_call.1} parent=11 // pred_check
          %p289 = pneg %p75
        $region14: #{tpu_custom_call.1} parent=11 // pred_check_branch
          %291 = sbr.rel (%p289) target = $region16
        $region15: #{tpu_custom_call.1} parent=11 // pred_region
          %s293 = ssub.s32 4096, 4096
          %294 = vsyncadd [#allocation6], %s293
          %s295 = sshll.u32 [#allocation5], 4
          %s296 = int_to_ptr.vmem [resolvable:$true] %s295
          %301 = dma.hbm_to_vmem [thread:$0]  %s1, 4096, %s296, [#allocation6], 128, 128, 8
        $region16: #{tpu_custom_call.1} parent=11 // pred_fallthru
          _
        // Predicated region
        $region17: #{tpu_custom_call.1} parent=11 // pred_check
          %p302 = pneg %p96
        $region18: #{tpu_custom_call.1} parent=11 // pred_check_branch
          %304 = sbr.rel (%p302) target = $region20
        $region19: #{tpu_custom_call.1} parent=11 // pred_region
          _
        $region20: #{tpu_custom_call.1} parent=11 // pred_fallthru
          _
        // Predicated region
        $region21: #{tpu_custom_call.1} parent=11 // pred_check
          %p305 = pneg %p117
        $region22: #{tpu_custom_call.1} parent=11 // pred_check_branch
          %307 = sbr.rel (%p305) target = $region24
        $region23: #{tpu_custom_call.1} parent=11 // pred_region
          %s309 = ssub.s32 2048, 2048
          %310 = vsyncadd [#allocation6], %s309
          %s311 = sshll.u32 [#allocation7], 4
          %s312 = int_to_ptr.vmem [resolvable:$true] %s311
          %317 = dma.hbm_to_vmem [thread:$0]  %s3, 2048, %s312, [#allocation6], 64, 64, 4
        $region24: #{tpu_custom_call.1} parent=11 // pred_fallthru
          _
        // Predicated region
        $region25: #{tpu_custom_call.1} parent=11 // pred_check
          %p318 = pneg %p138
        $region26: #{tpu_custom_call.1} parent=11 // pred_check_branch
          %320 = sbr.rel (%p318) target = $region28
        $region27: #{tpu_custom_call.1} parent=11 // pred_region
          _
        $region28: #{tpu_custom_call.1} parent=11 // pred_fallthru
          _
        // Predicated region
        $region29: #{tpu_custom_call.1} parent=11 // pred_check
          %p321 = pneg %p159
        $region30: #{tpu_custom_call.1} parent=11 // pred_check_branch
          %323 = sbr.rel (%p321) target = $region32
        $region31: #{tpu_custom_call.1} parent=11 // pred_region
          %s325 = ssub.s32 2048, 2048
          %326 = vsyncadd [#allocation9], %s325
          %s327 = sshll.u32 [#allocation8], 4
          %s328 = int_to_ptr.vmem [resolvable:$true] %s327
          %333 = dma.hbm_to_vmem [thread:$0]  %s5, 2048, %s328, [#allocation9], 128, 128, 8
        $region32: #{tpu_custom_call.1} parent=11 // pred_fallthru
          _
        // Predicated region
        $region33: #{tpu_custom_call.1} parent=11 // pred_check
          %p334 = pneg %p180
        $region34: #{tpu_custom_call.1} parent=11 // pred_check_branch
          %336 = sbr.rel (%p334) target = $region36
        $region35: #{tpu_custom_call.1} parent=11 // pred_region
          _
        $region36: #{tpu_custom_call.1} parent=11 // pred_fallthru
          _
        // Predicated region
        $region37: #{tpu_custom_call.1} parent=11 // pred_check
          %p337 = pneg %p201
        $region38: #{tpu_custom_call.1} parent=11 // pred_check_branch
          %339 = sbr.rel (%p337) target = $region40
        $region39: #{tpu_custom_call.1} parent=11 // pred_region
          %s341 = ssub.s32 4096, 4096
          %342 = vsyncadd [#allocation9], %s341
          %s343 = sshll.u32 [#allocation10], 4
          %s344 = int_to_ptr.vmem [resolvable:$true] %s343
          %349 = dma.hbm_to_vmem [thread:$0]  %s7, 4096, %s344, [#allocation9], 128, 128, 8
        $region40: #{tpu_custom_call.1} parent=11 // pred_fallthru
          _
        // Predicated region
        $region41: #{tpu_custom_call.1} parent=11 // pred_check
          %p350 = pneg %p222
        $region42: #{tpu_custom_call.1} parent=11 // pred_check_branch
          %352 = sbr.rel (%p350) target = $region44
        $region43: #{tpu_custom_call.1} parent=11 // pred_region
          _
        $region44: #{tpu_custom_call.1} parent=11 // pred_fallthru
          _
      $region12: #{tpu_custom_call.1} parent=5 // pred_fallthru
        _
      %p353 = scmp.lt.s32.totalorder %s28, 2
      // Predicated region
      $region45: #{tpu_custom_call.1} parent=5 // pred_check
        %p354 = pneg %p353
      $region46: #{tpu_custom_call.1} parent=5 // pred_check_branch
        %356 = sbr.rel (%p354) target = $region48
      $region47: #{tpu_custom_call.1} parent=5 // pred_region
        // Predicated region
        $region49: #{tpu_custom_call.1} parent=47 // pred_check
          %p357 = pneg %p48
        $region50: #{tpu_custom_call.1} parent=47 // pred_check_branch
          %359 = sbr.rel (%p357) target = $region52
        $region51: #{tpu_custom_call.1} parent=47 // pred_region
          %s360 = sand.u32 %s38, 1
          %s361 = scalar_lea.sflag [#allocation3], %s360
          %s362 = sand.u32 %s38, 1
          %s363 = smul.addr %s362, 256
          %s364 = scalar_lea.vmem [#allocation2], %s363
          %s365 = smul.u32 32, %s28
          %s367 = ssub.s32 4096, 4096
          %368 = vsyncadd %s361, %s367
          %s369 = smul.addr %s365, 2
          %s370 = smul.addr %s369, 64
          %s371 = scalar_lea.hbm %s0, %s370
          %s372 = sshll.u32 %s364, 4
          %s373 = int_to_ptr.vmem [resolvable:$true] %s372
          %378 = dma.hbm_to_vmem [thread:$0]  %s371, 4096, %s373, %s361, 128, 128, 8
        $region52: #{tpu_custom_call.1} parent=47 // pred_fallthru
          _
      $region48: #{tpu_custom_call.1} parent=5 // pred_fallthru
        _
      %p379 = scmp.le.s32.totalorder 1, %s28
      %p380 = scmp.lt.s32.totalorder %s28, 3
      %p381 = pnand %p379, %p380
      %p382 = pneg %p381
      // Predicated region
      $region53: #{tpu_custom_call.1} parent=5 // pred_check
        _
      $region54: #{tpu_custom_call.1} parent=5 // pred_check_branch
        %384 = sbr.rel (%p381) target = $region56
      $region55: #{tpu_custom_call.1} parent=5 // pred_region
        %s385 = ssub.s32 %s28, 1
        %s386 = sand.u32 %s41, 1
        %s387 = scalar_lea.sflag [#allocation3], %s386
        %s388 = sand.u32 %s41, 1
        %s389 = smul.addr %s388, 256
        %s390 = scalar_lea.vmem [#allocation2], %s389
        // Predicated region
        $region57: #{tpu_custom_call.1} parent=55 // pred_check
          %p391 = pneg %p54
        $region58: #{tpu_custom_call.1} parent=55 // pred_check_branch
          %393 = sbr.rel (%p391) target = $region60
        $region59: #{tpu_custom_call.1} parent=55 // pred_region
          %394 = dma.done %s387, 4096
        $region60: #{tpu_custom_call.1} parent=55 // pred_fallthru
          _
        // Predicated region
        $region61: #{tpu_custom_call.1} parent=55 // pred_check
          %p395 = pneg %p75
        $region62: #{tpu_custom_call.1} parent=55 // pred_check_branch
          %397 = sbr.rel (%p395) target = $region64
        $region63: #{tpu_custom_call.1} parent=55 // pred_region
          %398 = dma.done [#allocation6], 4096
        $region64: #{tpu_custom_call.1} parent=55 // pred_fallthru
          _
        // Predicated region
        $region65: #{tpu_custom_call.1} parent=55 // pred_check
          %p399 = pneg %p117
        $region66: #{tpu_custom_call.1} parent=55 // pred_check_branch
          %401 = sbr.rel (%p399) target = $region68
        $region67: #{tpu_custom_call.1} parent=55 // pred_region
          %402 = dma.done [#allocation6], 2048
        $region68: #{tpu_custom_call.1} parent=55 // pred_fallthru
          _
        // Predicated region
        $region69: #{tpu_custom_call.1} parent=55 // pred_check
          %p403 = pneg %p159
        $region70: #{tpu_custom_call.1} parent=55 // pred_check_branch
          %405 = sbr.rel (%p403) target = $region72
        $region71: #{tpu_custom_call.1} parent=55 // pred_region
          %406 = dma.done [#allocation9], 2048
        $region72: #{tpu_custom_call.1} parent=55 // pred_fallthru
          _
        // Predicated region
        $region73: #{tpu_custom_call.1} parent=55 // pred_check
          %p407 = pneg %p201
        $region74: #{tpu_custom_call.1} parent=55 // pred_check_branch
          %409 = sbr.rel (%p407) target = $region76
        $region75: #{tpu_custom_call.1} parent=55 // pred_region
          %410 = dma.done [#allocation9], 4096
        $region76: #{tpu_custom_call.1} parent=55 // pred_fallthru
          _
        %s411 = sand.u32 %s41, 1
        %s412 = scalar_lea.sflag [#allocation3], %s411
        %s413 = sand.u32 %s41, 1
        %s414 = smul.addr %s413, 256
        %s415 = scalar_lea.vmem [#allocation2], %s414
        %p416 = pneg %p54
        %p417 = pneg %p51
        %p418 = pneg %p75
        %p419 = pneg %p72
        %p420 = pneg %p96
        %p421 = pneg %p93
        %p422 = pneg %p117
        %p423 = pneg %p114
        %p424 = pneg %p138
        %p425 = pneg %p135
        %p426 = pneg %p159
        %p427 = pneg %p156
        %p428 = pneg %p180
        %p429 = pneg %p177
        %p430 = pneg %p201
        %p431 = pneg %p198
        %p432 = pneg %p222
        %p433 = pneg %p219
        %p434 = pneg %p248
        %p435 = pneg %p245
        %s436 = sand.u32 %s235, 1
        %s437 = scalar_lea.sflag [#allocation4], %s436
        %s438 = sand.u32 %s235, 1
        %s439 = smul.addr %s438, 256
        %s440 = scalar_lea.vmem [#allocation11], %s439
        %p441 = pneg %p274
        %p442 = pneg %p271
        %s443 = sand.u32 %s261, 1
        %s444 = scalar_lea.sflag [#allocation13], %s443
        %s445 = sand.u32 %s261, 1
        %s446 = smul.addr %s445, 512
        %s447 = scalar_lea.vmem [#allocation12], %s446
        %s448 = smul.u32 32, %s33
        %s449 = smul.u32 32, %s33
        %s450 = smul.u32 32, %s33
        %v452 = vld [vmem:[%s390] sm:$0xff]
        %v453 = vld [vmem:[%s390 + $0x8] sm:$0xff]
        %v454 = vld [vmem:[%s390 + $0x10] sm:$0xff]
        %v455 = vld [vmem:[%s390 + $0x18] sm:$0xff]
        %v456 = vld [vmem:[%s390 + $0x20] sm:$0xff]
        %v457 = vld [vmem:[%s390 + $0x28] sm:$0xff]
        %v458 = vld [vmem:[%s390 + $0x30] sm:$0xff]
        %v459 = vld [vmem:[%s390 + $0x38] sm:$0xff]
        %v460 = vld [vmem:[%s390 + $0x40] sm:$0xff]
        %v461 = vld [vmem:[%s390 + $0x48] sm:$0xff]
        %v462 = vld [vmem:[%s390 + $0x50] sm:$0xff]
        %v463 = vld [vmem:[%s390 + $0x58] sm:$0xff]
        %v464 = vld [vmem:[%s390 + $0x60] sm:$0xff]
        %v465 = vld [vmem:[%s390 + $0x68] sm:$0xff]
        %v466 = vld [vmem:[%s390 + $0x70] sm:$0xff]
        %v467 = vld [vmem:[%s390 + $0x78] sm:$0xff]
        %v468 = vld [vmem:[%s390 + $0x80] sm:$0xff]
        %v469 = vld [vmem:[%s390 + $0x88] sm:$0xff]
        %v470 = vld [vmem:[%s390 + $0x90] sm:$0xff]
        %v471 = vld [vmem:[%s390 + $0x98] sm:$0xff]
        %v472 = vld [vmem:[%s390 + $0xa0] sm:$0xff]
        %v473 = vld [vmem:[%s390 + $0xa8] sm:$0xff]
        %v474 = vld [vmem:[%s390 + $0xb0] sm:$0xff]
        %v475 = vld [vmem:[%s390 + $0xb8] sm:$0xff]
        %v476 = vld [vmem:[%s390 + $0xc0] sm:$0xff]
        %v477 = vld [vmem:[%s390 + $0xc8] sm:$0xff]
        %v478 = vld [vmem:[%s390 + $0xd0] sm:$0xff]
        %v479 = vld [vmem:[%s390 + $0xd8] sm:$0xff]
        %v480 = vld [vmem:[%s390 + $0xe0] sm:$0xff]
        %v481 = vld [vmem:[%s390 + $0xe8] sm:$0xff]
        %v482 = vld [vmem:[%s390 + $0xf0] sm:$0xff]
        %v483 = vld [vmem:[%s390 + $0xf8] sm:$0xff]
        %v484 = vld [vmem:[#allocation5] sm:$0xff]
        %v485 = vld [vmem:[#allocation5 + $0x8] sm:$0xff]
        %v486 = vld [vmem:[#allocation5 + $0x10] sm:$0xff]
        %v487 = vld [vmem:[#allocation5 + $0x18] sm:$0xff]
        %v488 = vld [vmem:[#allocation5 + $0x20] sm:$0xff]
        %v489 = vld [vmem:[#allocation5 + $0x28] sm:$0xff]
        %v490 = vld [vmem:[#allocation5 + $0x30] sm:$0xff]
        %v491 = vld [vmem:[#allocation5 + $0x38] sm:$0xff]
        %v492 = vld [vmem:[#allocation5 + $0x40] sm:$0xff]
        %v493 = vld [vmem:[#allocation5 + $0x48] sm:$0xff]
        %v494 = vld [vmem:[#allocation5 + $0x50] sm:$0xff]
        %v495 = vld [vmem:[#allocation5 + $0x58] sm:$0xff]
        %v496 = vld [vmem:[#allocation5 + $0x60] sm:$0xff]
        %v497 = vld [vmem:[#allocation5 + $0x68] sm:$0xff]
        %v498 = vld [vmem:[#allocation5 + $0x70] sm:$0xff]
        %v499 = vld [vmem:[#allocation5 + $0x78] sm:$0xff]
        %v500 = vld [vmem:[#allocation5 + $0x80] sm:$0xff]
        %v501 = vld [vmem:[#allocation5 + $0x88] sm:$0xff]
        %v502 = vld [vmem:[#allocation5 + $0x90] sm:$0xff]
        %v503 = vld [vmem:[#allocation5 + $0x98] sm:$0xff]
        %v504 = vld [vmem:[#allocation5 + $0xa0] sm:$0xff]
        %v505 = vld [vmem:[#allocation5 + $0xa8] sm:$0xff]
        %v506 = vld [vmem:[#allocation5 + $0xb0] sm:$0xff]
        %v507 = vld [vmem:[#allocation5 + $0xb8] sm:$0xff]
        %v508 = vld [vmem:[#allocation5 + $0xc0] sm:$0xff]
        %v509 = vld [vmem:[#allocation5 + $0xc8] sm:$0xff]
        %v510 = vld [vmem:[#allocation5 + $0xd0] sm:$0xff]
        %v511 = vld [vmem:[#allocation5 + $0xd8] sm:$0xff]
        %v512 = vld [vmem:[#allocation5 + $0xe0] sm:$0xff]
        %v513 = vld [vmem:[#allocation5 + $0xe8] sm:$0xff]
        %v514 = vld [vmem:[#allocation5 + $0xf0] sm:$0xff]
        %v515 = vld [vmem:[#allocation5 + $0xf8] sm:$0xff]
        %v516 = vld [vmem:[%s2] sm:$0x3]
        %v518 = vlaneseq
        %v519 = vshrl.u32 %v518, 7
        %v520 = vsub.s32 0, %v519
        %v521 = vrot.slane %v516, %v520
        %v522 = vlaneseq
        %v523 = vshrl.u32 %v522, 7
        %v524 = vsub.s32 1, %v523
        %v525 = vrot.slane %v516, %v524
        %v560 = vunpack.c.l.b16 %v452
        %v561 = vunpack.c.h.b16 %v452
        %v562 = vunpack.c.l.b16 %v453
        %v563 = vunpack.c.h.b16 %v453
        %v564 = vunpack.c.l.b16 %v454
        %v565 = vunpack.c.h.b16 %v454
        %v566 = vunpack.c.l.b16 %v455
        %v567 = vunpack.c.h.b16 %v455
        %v568 = vunpack.c.l.b16 %v456
        %v569 = vunpack.c.h.b16 %v456
        %v570 = vunpack.c.l.b16 %v457
        %v571 = vunpack.c.h.b16 %v457
        %v572 = vunpack.c.l.b16 %v458
        %v573 = vunpack.c.h.b16 %v458
        %v574 = vunpack.c.l.b16 %v459
        %v575 = vunpack.c.h.b16 %v459
        %v576 = vunpack.c.l.b16 %v460
        %v577 = vunpack.c.h.b16 %v460
        %v578 = vunpack.c.l.b16 %v461
        %v579 = vunpack.c.h.b16 %v461
        %v580 = vunpack.c.l.b16 %v462
        %v581 = vunpack.c.h.b16 %v462
        %v582 = vunpack.c.l.b16 %v463
        %v583 = vunpack.c.h.b16 %v463
        %v584 = vunpack.c.l.b16 %v464
        %v585 = vunpack.c.h.b16 %v464
        %v586 = vunpack.c.l.b16 %v465
        %v587 = vunpack.c.h.b16 %v465
        %v588 = vunpack.c.l.b16 %v466
        %v589 = vunpack.c.h.b16 %v466
        %v590 = vunpack.c.l.b16 %v467
        %v591 = vunpack.c.h.b16 %v467
        %v592 = vunpack.c.l.b16 %v468
        %v593 = vunpack.c.h.b16 %v468
        %v594 = vunpack.c.l.b16 %v469
        %v595 = vunpack.c.h.b16 %v469
        %v596 = vunpack.c.l.b16 %v470
        %v597 = vunpack.c.h.b16 %v470
        %v598 = vunpack.c.l.b16 %v471
        %v599 = vunpack.c.h.b16 %v471
        %v600 = vunpack.c.l.b16 %v472
        %v601 = vunpack.c.h.b16 %v472
        %v602 = vunpack.c.l.b16 %v473
        %v603 = vunpack.c.h.b16 %v473
        %v604 = vunpack.c.l.b16 %v474
        %v605 = vunpack.c.h.b16 %v474
        %v606 = vunpack.c.l.b16 %v475
        %v607 = vunpack.c.h.b16 %v475
        %v608 = vunpack.c.l.b16 %v476
        %v609 = vunpack.c.h.b16 %v476
        %v610 = vunpack.c.l.b16 %v477
        %v611 = vunpack.c.h.b16 %v477
        %v612 = vunpack.c.l.b16 %v478
        %v613 = vunpack.c.h.b16 %v478
        %v614 = vunpack.c.l.b16 %v479
        %v615 = vunpack.c.h.b16 %v479
        %v616 = vunpack.c.l.b16 %v480
        %v617 = vunpack.c.h.b16 %v480
        %v618 = vunpack.c.l.b16 %v481
        %v619 = vunpack.c.h.b16 %v481
        %v620 = vunpack.c.l.b16 %v482
        %v621 = vunpack.c.h.b16 %v482
        %v622 = vunpack.c.l.b16 %v483
        %v623 = vunpack.c.h.b16 %v483
        %v624 = vpack.c.b16 %v562, %v560
        %v625 = vpack.c.b16 %v563, %v561
        %v626 = vpack.c.b16 %v566, %v564
        %v627 = vpack.c.b16 %v567, %v565
        %v628 = vpack.c.b16 %v570, %v568
        %v629 = vpack.c.b16 %v571, %v569
        %v630 = vpack.c.b16 %v574, %v572
        %v631 = vpack.c.b16 %v575, %v573
        %v632 = vpack.c.b16 %v578, %v576
        %v633 = vpack.c.b16 %v579, %v577
        %v634 = vpack.c.b16 %v582, %v580
        %v635 = vpack.c.b16 %v583, %v581
        %v636 = vpack.c.b16 %v586, %v584
        %v637 = vpack.c.b16 %v587, %v585
        %v638 = vpack.c.b16 %v590, %v588
        %v639 = vpack.c.b16 %v591, %v589
        %v640 = vpack.c.b16 %v594, %v592
        %v641 = vpack.c.b16 %v595, %v593
        %v642 = vpack.c.b16 %v598, %v596
        %v643 = vpack.c.b16 %v599, %v597
        %v644 = vpack.c.b16 %v602, %v600
        %v645 = vpack.c.b16 %v603, %v601
        %v646 = vpack.c.b16 %v606, %v604
        %v647 = vpack.c.b16 %v607, %v605
        %v648 = vpack.c.b16 %v610, %v608
        %v649 = vpack.c.b16 %v611, %v609
        %v650 = vpack.c.b16 %v614, %v612
        %v651 = vpack.c.b16 %v615, %v613
        %v652 = vpack.c.b16 %v618, %v616
        %v653 = vpack.c.b16 %v619, %v617
        %v654 = vpack.c.b16 %v622, %v620
        %v655 = vpack.c.b16 %v623, %v621
        %v720 = vunpack.c.l.b16 %v484
        %v721 = vunpack.c.h.b16 %v484
        %v722 = vunpack.c.l.b16 %v485
        %v723 = vunpack.c.h.b16 %v485
        %v724 = vunpack.c.l.b16 %v486
        %v725 = vunpack.c.h.b16 %v486
        %v726 = vunpack.c.l.b16 %v487
        %v727 = vunpack.c.h.b16 %v487
        %v728 = vunpack.c.l.b16 %v488
        %v729 = vunpack.c.h.b16 %v488
        %v730 = vunpack.c.l.b16 %v489
        %v731 = vunpack.c.h.b16 %v489
        %v732 = vunpack.c.l.b16 %v490
        %v733 = vunpack.c.h.b16 %v490
        %v734 = vunpack.c.l.b16 %v491
        %v735 = vunpack.c.h.b16 %v491
        %v736 = vunpack.c.l.b16 %v492
        %v737 = vunpack.c.h.b16 %v492
        %v738 = vunpack.c.l.b16 %v493
        %v739 = vunpack.c.h.b16 %v493
        %v740 = vunpack.c.l.b16 %v494
        %v741 = vunpack.c.h.b16 %v494
        %v742 = vunpack.c.l.b16 %v495
        %v743 = vunpack.c.h.b16 %v495
        %v744 = vunpack.c.l.b16 %v496
        %v745 = vunpack.c.h.b16 %v496
        %v746 = vunpack.c.l.b16 %v497
        %v747 = vunpack.c.h.b16 %v497
        %v748 = vunpack.c.l.b16 %v498
        %v749 = vunpack.c.h.b16 %v498
        %v750 = vunpack.c.l.b16 %v499
        %v751 = vunpack.c.h.b16 %v499
        %v752 = vunpack.c.l.b16 %v500
        %v753 = vunpack.c.h.b16 %v500
        %v754 = vunpack.c.l.b16 %v501
        %v755 = vunpack.c.h.b16 %v501
        %v756 = vunpack.c.l.b16 %v502
        %v757 = vunpack.c.h.b16 %v502
        %v758 = vunpack.c.l.b16 %v503
        %v759 = vunpack.c.h.b16 %v503
        %v760 = vunpack.c.l.b16 %v504
        %v761 = vunpack.c.h.b16 %v504
        %v762 = vunpack.c.l.b16 %v505
        %v763 = vunpack.c.h.b16 %v505
        %v764 = vunpack.c.l.b16 %v506
        %v765 = vunpack.c.h.b16 %v506
        %v766 = vunpack.c.l.b16 %v507
        %v767 = vunpack.c.h.b16 %v507
        %v768 = vunpack.c.l.b16 %v508
        %v769 = vunpack.c.h.b16 %v508
        %v770 = vunpack.c.l.b16 %v509
        %v771 = vunpack.c.h.b16 %v509
        %v772 = vunpack.c.l.b16 %v510
        %v773 = vunpack.c.h.b16 %v510
        %v774 = vunpack.c.l.b16 %v511
        %v775 = vunpack.c.h.b16 %v511
        %v776 = vunpack.c.l.b16 %v512
        %v777 = vunpack.c.h.b16 %v512
        %v778 = vunpack.c.l.b16 %v513
        %v779 = vunpack.c.h.b16 %v513
        %v780 = vunpack.c.l.b16 %v514
        %v781 = vunpack.c.h.b16 %v514
        %v782 = vunpack.c.l.b16 %v515
        %v783 = vunpack.c.h.b16 %v515
        %v784 = vpack.c.b16 %v722, %v720
        %v785 = vpack.c.b16 %v723, %v721
        %v786 = vpack.c.b16 %v726, %v724
        %v787 = vpack.c.b16 %v727, %v725
        %v788 = vpack.c.b16 %v730, %v728
        %v789 = vpack.c.b16 %v731, %v729
        %v790 = vpack.c.b16 %v734, %v732
        %v791 = vpack.c.b16 %v735, %v733
        %v792 = vpack.c.b16 %v738, %v736
        %v793 = vpack.c.b16 %v739, %v737
        %v794 = vpack.c.b16 %v742, %v740
        %v795 = vpack.c.b16 %v743, %v741
        %v796 = vpack.c.b16 %v746, %v744
        %v797 = vpack.c.b16 %v747, %v745
        %v798 = vpack.c.b16 %v750, %v748
        %v799 = vpack.c.b16 %v751, %v749
        %v800 = vpack.c.b16 %v754, %v752
        %v801 = vpack.c.b16 %v755, %v753
        %v802 = vpack.c.b16 %v758, %v756
        %v803 = vpack.c.b16 %v759, %v757
        %v804 = vpack.c.b16 %v762, %v760
        %v805 = vpack.c.b16 %v763, %v761
        %v806 = vpack.c.b16 %v766, %v764
        %v807 = vpack.c.b16 %v767, %v765
        %v808 = vpack.c.b16 %v770, %v768
        %v809 = vpack.c.b16 %v771, %v769
        %v810 = vpack.c.b16 %v774, %v772
        %v811 = vpack.c.b16 %v775, %v773
        %v812 = vpack.c.b16 %v778, %v776
        %v813 = vpack.c.b16 %v779, %v777
        %v814 = vpack.c.b16 %v782, %v780
        %v815 = vpack.c.b16 %v783, %v781
        %848 = vmatprep.subr.bf16.mxu0 %v785
        %849 = vmatpush1.bf16.msra.mxu0 %v784
        %850 = vmatprep.subr.bf16.mxu0 %v787
        %851 = vmatpush1.bf16.msra.mxu0 %v786
        %852 = vmatprep.subr.bf16.mxu0 %v789
        %853 = vmatpush1.bf16.msra.mxu0 %v788
        %854 = vmatprep.subr.bf16.mxu0 %v791
        %855 = vmatpush1.bf16.msra.mxu0 %v790
        %856 = vmatprep.subr.bf16.mxu0 %v793
        %857 = vmatpush1.bf16.msra.mxu0 %v792
        %858 = vmatprep.subr.bf16.mxu0 %v795
        %859 = vmatpush1.bf16.msra.mxu0 %v794
        %860 = vmatprep.subr.bf16.mxu0 %v797
        %861 = vmatpush1.bf16.msra.mxu0 %v796
        %862 = vmatprep.subr.bf16.mxu0 %v799
        %863 = vmatpush1.bf16.msra.mxu0 %v798
        %864 = vmatprep.subr.bf16.mxu0 %v801
        %865 = vmatpush1.bf16.msra.mxu0 %v800
        %866 = vmatprep.subr.bf16.mxu0 %v803
        %867 = vmatpush1.bf16.msra.mxu0 %v802
        %868 = vmatprep.subr.bf16.mxu0 %v805
        %869 = vmatpush1.bf16.msra.mxu0 %v804
        %870 = vmatprep.subr.bf16.mxu0 %v807
        %871 = vmatpush1.bf16.msra.mxu0 %v806
        %872 = vmatprep.subr.bf16.mxu0 %v809
        %873 = vmatpush1.bf16.msra.mxu0 %v808
        %874 = vmatprep.subr.bf16.mxu0 %v811
        %875 = vmatpush1.bf16.msra.mxu0 %v810
        %876 = vmatprep.subr.bf16.mxu0 %v813
        %877 = vmatpush1.bf16.msra.mxu0 %v812
        %878 = vmatprep.subr.bf16.mxu0 %v815
        %879 = vmatpush1.bf16.msra.mxu0 %v814
        %880 = vmatprep.mubr.bf16.mxu0 %v625
        %881 = vmatmul.mubr.bf16.gmra.mrb[0].mxu0 %v624
        %v882 = vpop.f32.mrb[0].mxu0
        %v883 = vadd.f32 %v521, %v882
        %v884 = vpop.f32.mrb[0].mxu0
        %v885 = vadd.f32 %v525, %v884
        %v886 = vpop.f32.mrb[0].mxu0
        %v887 = vadd.f32 %v521, %v886
        %v888 = vpop.f32.mrb[0].mxu0
        %v889 = vadd.f32 %v525, %v888
        %890 = vmatprep.mubr.bf16.mxu0 %v627
        %891 = vmatmul.mubr.bf16.gmra.mrb[0].mxu0 %v626
        %v892 = vpop.f32.mrb[0].mxu0
        %v893 = vadd.f32 %v521, %v892
        %v894 = vpop.f32.mrb[0].mxu0
        %v895 = vadd.f32 %v525, %v894
        %v896 = vpop.f32.mrb[0].mxu0
        %v897 = vadd.f32 %v521, %v896
        %v898 = vpop.f32.mrb[0].mxu0
        %v899 = vadd.f32 %v525, %v898
        %900 = vmatprep.mubr.bf16.mxu0 %v629
        %901 = vmatmul.mubr.bf16.gmra.mrb[0].mxu0 %v628
        %v902 = vpop.f32.mrb[0].mxu0
        %v903 = vadd.f32 %v521, %v902
        %v904 = vpop.f32.mrb[0].mxu0
        %v905 = vadd.f32 %v525, %v904
        %v906 = vpop.f32.mrb[0].mxu0
        %v907 = vadd.f32 %v521, %v906
        %v908 = vpop.f32.mrb[0].mxu0
        %v909 = vadd.f32 %v525, %v908
        %910 = vmatprep.mubr.bf16.mxu0 %v631
        %911 = vmatmul.mubr.bf16.gmra.mrb[0].mxu0 %v630
        %v912 = vpop.f32.mrb[0].mxu0
        %v913 = vadd.f32 %v521, %v912
        %v914 = vpop.f32.mrb[0].mxu0
        %v915 = vadd.f32 %v525, %v914
        %v916 = vpop.f32.mrb[0].mxu0
        %v917 = vadd.f32 %v521, %v916
        %v918 = vpop.f32.mrb[0].mxu0
        %v919 = vadd.f32 %v525, %v918
        %920 = vmatprep.mubr.bf16.mxu0 %v633
        %921 = vmatmul.mubr.bf16.gmra.mrb[0].mxu0 %v632
        %v922 = vpop.f32.mrb[0].mxu0
        %v923 = vadd.f32 %v521, %v922
        %v924 = vpop.f32.mrb[0].mxu0
        %v925 = vadd.f32 %v525, %v924
        %v926 = vpop.f32.mrb[0].mxu0
        %v927 = vadd.f32 %v521, %v926
        %v928 = vpop.f32.mrb[0].mxu0
        %v929 = vadd.f32 %v525, %v928
        %930 = vmatprep.mubr.bf16.mxu0 %v635
        %931 = vmatmul.mubr.bf16.gmra.mrb[0].mxu0 %v634
        %v932 = vpop.f32.mrb[0].mxu0
        %v933 = vadd.f32 %v521, %v932
        %v934 = vpop.f32.mrb[0].mxu0
        %v935 = vadd.f32 %v525, %v934
        %v936 = vpop.f32.mrb[0].mxu0
        %v937 = vadd.f32 %v521, %v936
        %v938 = vpop.f32.mrb[0].mxu0
        %v939 = vadd.f32 %v525, %v938
        %940 = vmatprep.mubr.bf16.mxu0 %v637
        %941 = vmatmul.mubr.bf16.gmra.mrb[0].mxu0 %v636
        %v942 = vpop.f32.mrb[0].mxu0
        %v943 = vadd.f32 %v521, %v942
        %v944 = vpop.f32.mrb[0].mxu0
        %v945 = vadd.f32 %v525, %v944
        %v946 = vpop.f32.mrb[0].mxu0
        %v947 = vadd.f32 %v521, %v946
        %v948 = vpop.f32.mrb[0].mxu0
        %v949 = vadd.f32 %v525, %v948
        %950 = vmatprep.mubr.bf16.mxu0 %v639
        %951 = vmatmul.mubr.bf16.gmra.mrb[0].mxu0 %v638
        %v952 = vpop.f32.mrb[0].mxu0
        %v953 = vadd.f32 %v521, %v952
        %v954 = vpop.f32.mrb[0].mxu0
        %v955 = vadd.f32 %v525, %v954
        %v956 = vpop.f32.mrb[0].mxu0
        %v957 = vadd.f32 %v521, %v956
        %v958 = vpop.f32.mrb[0].mxu0
        %v959 = vadd.f32 %v525, %v958
        %960 = vmatprep.mubr.bf16.mxu0 %v641
        %961 = vmatmul.mubr.bf16.gmra.mrb[0].mxu0 %v640
        %v962 = vpop.f32.mrb[0].mxu0
        %v963 = vadd.f32 %v521, %v962
        %v964 = vpop.f32.mrb[0].mxu0
        %v965 = vadd.f32 %v525, %v964
        %v966 = vpop.f32.mrb[0].mxu0
        %v967 = vadd.f32 %v521, %v966
        %v968 = vpop.f32.mrb[0].mxu0
        %v969 = vadd.f32 %v525, %v968
        %970 = vmatprep.mubr.bf16.mxu0 %v643
        %971 = vmatmul.mubr.bf16.gmra.mrb[0].mxu0 %v642
        %v972 = vpop.f32.mrb[0].mxu0
        %v973 = vadd.f32 %v521, %v972
        %v974 = vpop.f32.mrb[0].mxu0
        %v975 = vadd.f32 %v525, %v974
        %v976 = vpop.f32.mrb[0].mxu0
        %v977 = vadd.f32 %v521, %v976
        %v978 = vpop.f32.mrb[0].mxu0
        %v979 = vadd.f32 %v525, %v978
        %980 = vmatprep.mubr.bf16.mxu0 %v645
        %981 = vmatmul.mubr.bf16.gmra.mrb[0].mxu0 %v644
        %v982 = vpop.f32.mrb[0].mxu0
        %v983 = vadd.f32 %v521, %v982
        %v984 = vpop.f32.mrb[0].mxu0
        %v985 = vadd.f32 %v525, %v984
        %v986 = vpop.f32.mrb[0].mxu0
        %v987 = vadd.f32 %v521, %v986
        %v988 = vpop.f32.mrb[0].mxu0
        %v989 = vadd.f32 %v525, %v988
        %990 = vmatprep.mubr.bf16.mxu0 %v647
        %991 = vmatmul.mubr.bf16.gmra.mrb[0].mxu0 %v646
        %v992 = vpop.f32.mrb[0].mxu0
        %v993 = vadd.f32 %v521, %v992
        %v994 = vpop.f32.mrb[0].mxu0
        %v995 = vadd.f32 %v525, %v994
        %v996 = vpop.f32.mrb[0].mxu0
        %v997 = vadd.f32 %v521, %v996
        %v998 = vpop.f32.mrb[0].mxu0
        %v999 = vadd.f32 %v525, %v998
        %1000 = vmatprep.mubr.bf16.mxu0 %v649
        %1001 = vmatmul.mubr.bf16.gmra.mrb[0].mxu0 %v648
        %v1002 = vpop.f32.mrb[0].mxu0
        %v1003 = vadd.f32 %v521, %v1002
        %v1004 = vpop.f32.mrb[0].mxu0
        %v1005 = vadd.f32 %v525, %v1004
        %v1006 = vpop.f32.mrb[0].mxu0
        %v1007 = vadd.f32 %v521, %v1006
        %v1008 = vpop.f32.mrb[0].mxu0
        %v1009 = vadd.f32 %v525, %v1008
        %1010 = vmatprep.mubr.bf16.mxu0 %v651
        %1011 = vmatmul.mubr.bf16.gmra.mrb[0].mxu0 %v650
        %v1012 = vpop.f32.mrb[0].mxu0
        %v1013 = vadd.f32 %v521, %v1012
        %v1014 = vpop.f32.mrb[0].mxu0
        %v1015 = vadd.f32 %v525, %v1014
        %v1016 = vpop.f32.mrb[0].mxu0
        %v1017 = vadd.f32 %v521, %v1016
        %v1018 = vpop.f32.mrb[0].mxu0
        %v1019 = vadd.f32 %v525, %v1018
        %1020 = vmatprep.mubr.bf16.mxu0 %v653
        %1021 = vmatmul.mubr.bf16.gmra.mrb[0].mxu0 %v652
        %v1022 = vpop.f32.mrb[0].mxu0
        %v1023 = vadd.f32 %v521, %v1022
        %v1024 = vpop.f32.mrb[0].mxu0
        %v1025 = vadd.f32 %v525, %v1024
        %v1026 = vpop.f32.mrb[0].mxu0
        %v1027 = vadd.f32 %v521, %v1026
        %v1028 = vpop.f32.mrb[0].mxu0
        %v1029 = vadd.f32 %v525, %v1028
        %1030 = vmatprep.mubr.bf16.mxu0 %v655
        %1031 = vmatmul.mubr.bf16.gmra.mrb[0].mxu0 %v654
        %v1032 = vpop.f32.mrb[0].mxu0
        %v1033 = vadd.f32 %v521, %v1032
        %v1034 = vpop.f32.mrb[0].mxu0
        %v1035 = vadd.f32 %v525, %v1034
        %v1036 = vpop.f32.mrb[0].mxu0
        %v1037 = vadd.f32 %v521, %v1036
        %v1038 = vpop.f32.mrb[0].mxu0
        %v1039 = vadd.f32 %v525, %v1038
        %1040 = vdwg.mxu0
        %v1041 = vmax.f32 %v883, 0.0
        %v1042 = vmax.f32 %v885, 0.0
        %v1043 = vmax.f32 %v887, 0.0
        %v1044 = vmax.f32 %v889, 0.0
        %v1045 = vmax.f32 %v893, 0.0
        %v1046 = vmax.f32 %v895, 0.0
        %v1047 = vmax.f32 %v897, 0.0
        %v1048 = vmax.f32 %v899, 0.0
        %v1049 = vmax.f32 %v903, 0.0
        %v1050 = vmax.f32 %v905, 0.0
        %v1051 = vmax.f32 %v907, 0.0
        %v1052 = vmax.f32 %v909, 0.0
        %v1053 = vmax.f32 %v913, 0.0
        %v1054 = vmax.f32 %v915, 0.0
        %v1055 = vmax.f32 %v917, 0.0
        %v1056 = vmax.f32 %v919, 0.0
        %v1057 = vmax.f32 %v923, 0.0
        %v1058 = vmax.f32 %v925, 0.0
        %v1059 = vmax.f32 %v927, 0.0
        %v1060 = vmax.f32 %v929, 0.0
        %v1061 = vmax.f32 %v933, 0.0
        %v1062 = vmax.f32 %v935, 0.0
        %v1063 = vmax.f32 %v937, 0.0
        %v1064 = vmax.f32 %v939, 0.0
        %v1065 = vmax.f32 %v943, 0.0
        %v1066 = vmax.f32 %v945, 0.0
        %v1067 = vmax.f32 %v947, 0.0
        %v1068 = vmax.f32 %v949, 0.0
        %v1069 = vmax.f32 %v953, 0.0
        %v1070 = vmax.f32 %v955, 0.0
        %v1071 = vmax.f32 %v957, 0.0
        %v1072 = vmax.f32 %v959, 0.0
        %v1073 = vmax.f32 %v963, 0.0
        %v1074 = vmax.f32 %v965, 0.0
        %v1075 = vmax.f32 %v967, 0.0
        %v1076 = vmax.f32 %v969, 0.0
        %v1077 = vmax.f32 %v973, 0.0
        %v1078 = vmax.f32 %v975, 0.0
        %v1079 = vmax.f32 %v977, 0.0
        %v1080 = vmax.f32 %v979, 0.0
        %v1081 = vmax.f32 %v983, 0.0
        %v1082 = vmax.f32 %v985, 0.0
        %v1083 = vmax.f32 %v987, 0.0
        %v1084 = vmax.f32 %v989, 0.0
        %v1085 = vmax.f32 %v993, 0.0
        %v1086 = vmax.f32 %v995, 0.0
        %v1087 = vmax.f32 %v997, 0.0
        %v1088 = vmax.f32 %v999, 0.0
        %v1089 = vmax.f32 %v1003, 0.0
        %v1090 = vmax.f32 %v1005, 0.0
        %v1091 = vmax.f32 %v1007, 0.0
        %v1092 = vmax.f32 %v1009, 0.0
        %v1093 = vmax.f32 %v1013, 0.0
        %v1094 = vmax.f32 %v1015, 0.0
        %v1095 = vmax.f32 %v1017, 0.0
        %v1096 = vmax.f32 %v1019, 0.0
        %v1097 = vmax.f32 %v1023, 0.0
        %v1098 = vmax.f32 %v1025, 0.0
        %v1099 = vmax.f32 %v1027, 0.0
        %v1100 = vmax.f32 %v1029, 0.0
        %v1101 = vmax.f32 %v1033, 0.0
        %v1102 = vmax.f32 %v1035, 0.0
        %v1103 = vmax.f32 %v1037, 0.0
        %v1104 = vmax.f32 %v1039, 0.0
        %v1105 = vpack.c.bf16 %v1043, %v1041
        %v1106 = vpack.c.bf16 %v1044, %v1042
        %v1107 = vpack.c.bf16 %v1047, %v1045
        %v1108 = vpack.c.bf16 %v1048, %v1046
        %v1109 = vpack.c.bf16 %v1051, %v1049
        %v1110 = vpack.c.bf16 %v1052, %v1050
        %v1111 = vpack.c.bf16 %v1055, %v1053
        %v1112 = vpack.c.bf16 %v1056, %v1054
        %v1113 = vpack.c.bf16 %v1059, %v1057
        %v1114 = vpack.c.bf16 %v1060, %v1058
        %v1115 = vpack.c.bf16 %v1063, %v1061
        %v1116 = vpack.c.bf16 %v1064, %v1062
        %v1117 = vpack.c.bf16 %v1067, %v1065
        %v1118 = vpack.c.bf16 %v1068, %v1066
        %v1119 = vpack.c.bf16 %v1071, %v1069
        %v1120 = vpack.c.bf16 %v1072, %v1070
        %v1121 = vpack.c.bf16 %v1075, %v1073
        %v1122 = vpack.c.bf16 %v1076, %v1074
        %v1123 = vpack.c.bf16 %v1079, %v1077
        %v1124 = vpack.c.bf16 %v1080, %v1078
        %v1125 = vpack.c.bf16 %v1083, %v1081
        %v1126 = vpack.c.bf16 %v1084, %v1082
        %v1127 = vpack.c.bf16 %v1087, %v1085
        %v1128 = vpack.c.bf16 %v1088, %v1086
        %v1129 = vpack.c.bf16 %v1091, %v1089
        %v1130 = vpack.c.bf16 %v1092, %v1090
        %v1131 = vpack.c.bf16 %v1095, %v1093
        %v1132 = vpack.c.bf16 %v1096, %v1094
        %v1133 = vpack.c.bf16 %v1099, %v1097
        %v1134 = vpack.c.bf16 %v1100, %v1098
        %v1135 = vpack.c.bf16 %v1103, %v1101
        %v1136 = vpack.c.bf16 %v1104, %v1102
        %v1137 = vld [vmem:[#allocation7] sm:$0xf]
        %v1138 = vld [vmem:[#allocation7 + $0x4] sm:$0xf]
        %v1139 = vld [vmem:[#allocation7 + $0x8] sm:$0xf]
        %v1140 = vld [vmem:[#allocation7 + $0xc] sm:$0xf]
        %v1141 = vld [vmem:[#allocation7 + $0x10] sm:$0xf]
        %v1142 = vld [vmem:[#allocation7 + $0x14] sm:$0xf]
        %v1143 = vld [vmem:[#allocation7 + $0x18] sm:$0xf]
        %v1144 = vld [vmem:[#allocation7 + $0x1c] sm:$0xf]
        %v1145 = vld [vmem:[#allocation7 + $0x20] sm:$0xf]
        %v1146 = vld [vmem:[#allocation7 + $0x24] sm:$0xf]
        %v1147 = vld [vmem:[#allocation7 + $0x28] sm:$0xf]
        %v1148 = vld [vmem:[#allocation7 + $0x2c] sm:$0xf]
        %v1149 = vld [vmem:[#allocation7 + $0x30] sm:$0xf]
        %v1150 = vld [vmem:[#allocation7 + $0x34] sm:$0xf]
        %v1151 = vld [vmem:[#allocation7 + $0x38] sm:$0xf]
        %v1152 = vld [vmem:[#allocation7 + $0x3c] sm:$0xf]
        %v1153 = vld [vmem:[#allocation7 + $0x40] sm:$0xf]
        %v1154 = vld [vmem:[#allocation7 + $0x44] sm:$0xf]
        %v1155 = vld [vmem:[#allocation7 + $0x48] sm:$0xf]
        %v1156 = vld [vmem:[#allocation7 + $0x4c] sm:$0xf]
        %v1157 = vld [vmem:[#allocation7 + $0x50] sm:$0xf]
        %v1158 = vld [vmem:[#allocation7 + $0x54] sm:$0xf]
        %v1159 = vld [vmem:[#allocation7 + $0x58] sm:$0xf]
        %v1160 = vld [vmem:[#allocation7 + $0x5c] sm:$0xf]
        %v1161 = vld [vmem:[#allocation7 + $0x60] sm:$0xf]
        %v1162 = vld [vmem:[#allocation7 + $0x64] sm:$0xf]
        %v1163 = vld [vmem:[#allocation7 + $0x68] sm:$0xf]
        %v1164 = vld [vmem:[#allocation7 + $0x6c] sm:$0xf]
        %v1165 = vld [vmem:[#allocation7 + $0x70] sm:$0xf]
        %v1166 = vld [vmem:[#allocation7 + $0x74] sm:$0xf]
        %v1167 = vld [vmem:[#allocation7 + $0x78] sm:$0xf]
        %v1168 = vld [vmem:[#allocation7 + $0x7c] sm:$0xf]
        %v1169 = vld [vmem:[%s4] sm:$0x1]
        %v1171 = vlaneseq
        %v1172 = vshrl.u32 %v1171, 7
        %v1173 = vsub.s32 0, %v1172
        %v1174 = vrot.slane %v1169, %v1173
        %v1208 = vunpack.c.l.b16 %v1137
        %v1209 = vunpack.c.l.b16 %v1138
        %v1210 = vunpack.c.l.b16 %v1139
        %v1211 = vunpack.c.l.b16 %v1140
        %v1212 = vunpack.c.l.b16 %v1141
        %v1213 = vunpack.c.l.b16 %v1142
        %v1214 = vunpack.c.l.b16 %v1143
        %v1215 = vunpack.c.l.b16 %v1144
        %v1216 = vunpack.c.l.b16 %v1145
        %v1217 = vunpack.c.l.b16 %v1146
        %v1218 = vunpack.c.l.b16 %v1147
        %v1219 = vunpack.c.l.b16 %v1148
        %v1220 = vunpack.c.l.b16 %v1149
        %v1221 = vunpack.c.l.b16 %v1150
        %v1222 = vunpack.c.l.b16 %v1151
        %v1223 = vunpack.c.l.b16 %v1152
        %v1224 = vunpack.c.l.b16 %v1153
        %v1225 = vunpack.c.l.b16 %v1154
        %v1226 = vunpack.c.l.b16 %v1155
        %v1227 = vunpack.c.l.b16 %v1156
        %v1228 = vunpack.c.l.b16 %v1157
        %v1229 = vunpack.c.l.b16 %v1158
        %v1230 = vunpack.c.l.b16 %v1159
        %v1231 = vunpack.c.l.b16 %v1160
        %v1232 = vunpack.c.l.b16 %v1161
        %v1233 = vunpack.c.l.b16 %v1162
        %v1234 = vunpack.c.l.b16 %v1163
        %v1235 = vunpack.c.l.b16 %v1164
        %v1236 = vunpack.c.l.b16 %v1165
        %v1237 = vunpack.c.l.b16 %v1166
        %v1238 = vunpack.c.l.b16 %v1167
        %v1239 = vunpack.c.l.b16 %v1168
        %v1240 = vpack.c.b16 %v1209, %v1208
        %v1241 = vpack.c.b16 %v1211, %v1210
        %v1242 = vpack.c.b16 %v1213, %v1212
        %v1243 = vpack.c.b16 %v1215, %v1214
        %v1244 = vpack.c.b16 %v1217, %v1216
        %v1245 = vpack.c.b16 %v1219, %v1218
        %v1246 = vpack.c.b16 %v1221, %v1220
        %v1247 = vpack.c.b16 %v1223, %v1222
        %v1248 = vpack.c.b16 %v1225, %v1224
        %v1249 = vpack.c.b16 %v1227, %v1226
        %v1250 = vpack.c.b16 %v1229, %v1228
        %v1251 = vpack.c.b16 %v1231, %v1230
        %v1252 = vpack.c.b16 %v1233, %v1232
        %v1253 = vpack.c.b16 %v1235, %v1234
        %v1254 = vpack.c.b16 %v1237, %v1236
        %v1255 = vpack.c.b16 %v1239, %v1238
        %1272 = vmatprep.subr.bf16.mxu0 0
        %1273 = vmatpush1.bf16.msra.mxu0 %v1240
        %1274 = vmatprep.subr.bf16.mxu0 0
        %1275 = vmatpush1.bf16.msra.mxu0 %v1241
        %1276 = vmatprep.subr.bf16.mxu0 0
        %1277 = vmatpush1.bf16.msra.mxu0 %v1242
        %1278 = vmatprep.subr.bf16.mxu0 0
        %1279 = vmatpush1.bf16.msra.mxu0 %v1243
        %1280 = vmatprep.subr.bf16.mxu0 0
        %1281 = vmatpush1.bf16.msra.mxu0 %v1244
        %1282 = vmatprep.subr.bf16.mxu0 0
        %1283 = vmatpush1.bf16.msra.mxu0 %v1245
        %1284 = vmatprep.subr.bf16.mxu0 0
        %1285 = vmatpush1.bf16.msra.mxu0 %v1246
        %1286 = vmatprep.subr.bf16.mxu0 0
        %1287 = vmatpush1.bf16.msra.mxu0 %v1247
        %1288 = vmatprep.subr.bf16.mxu0 0
        %1289 = vmatpush1.bf16.msra.mxu0 %v1248
        %1290 = vmatprep.subr.bf16.mxu0 0
        %1291 = vmatpush1.bf16.msra.mxu0 %v1249
        %1292 = vmatprep.subr.bf16.mxu0 0
        %1293 = vmatpush1.bf16.msra.mxu0 %v1250
        %1294 = vmatprep.subr.bf16.mxu0 0
        %1295 = vmatpush1.bf16.msra.mxu0 %v1251
        %1296 = vmatprep.subr.bf16.mxu0 0
        %1297 = vmatpush1.bf16.msra.mxu0 %v1252
        %1298 = vmatprep.subr.bf16.mxu0 0
        %1299 = vmatpush1.bf16.msra.mxu0 %v1253
        %1300 = vmatprep.subr.bf16.mxu0 0
        %1301 = vmatpush1.bf16.msra.mxu0 %v1254
        %1302 = vmatprep.subr.bf16.mxu0 0
        %1303 = vmatpush1.bf16.msra.mxu0 %v1255
        %1304 = vmatprep.mubr.bf16.mxu0 %v1106
        %1305 = vmatmul.mubr.bf16.gmra.mrb[0].mxu0 %v1105
        %v1306 = vpop.f32.mrb[0].mxu0
        %v1307 = vadd.f32 %v1174, %v1306
        %v1308 = vpop.f32.mrb[0].mxu0
        %v1309 = vpop.f32.mrb[0].mxu0
        %v1310 = vadd.f32 %v1174, %v1309
        %v1311 = vpop.f32.mrb[0].mxu0
        %1312 = vmatprep.mubr.bf16.mxu0 %v1108
        %1313 = vmatmul.mubr.bf16.gmra.mrb[0].mxu0 %v1107
        %v1314 = vpop.f32.mrb[0].mxu0
        %v1315 = vadd.f32 %v1174, %v1314
        %v1316 = vpop.f32.mrb[0].mxu0
        %v1317 = vpop.f32.mrb[0].mxu0
        %v1318 = vadd.f32 %v1174, %v1317
        %v1319 = vpop.f32.mrb[0].mxu0
        %1320 = vmatprep.mubr.bf16.mxu0 %v1110
        %1321 = vmatmul.mubr.bf16.gmra.mrb[0].mxu0 %v1109
        %v1322 = vpop.f32.mrb[0].mxu0
        %v1323 = vadd.f32 %v1174, %v1322
        %v1324 = vpop.f32.mrb[0].mxu0
        %v1325 = vpop.f32.mrb[0].mxu0
        %v1326 = vadd.f32 %v1174, %v1325
        %v1327 = vpop.f32.mrb[0].mxu0
        %1328 = vmatprep.mubr.bf16.mxu0 %v1112
        %1329 = vmatmul.mubr.bf16.gmra.mrb[0].mxu0 %v1111
        %v1330 = vpop.f32.mrb[0].mxu0
        %v1331 = vadd.f32 %v1174, %v1330
        %v1332 = vpop.f32.mrb[0].mxu0
        %v1333 = vpop.f32.mrb[0].mxu0
        %v1334 = vadd.f32 %v1174, %v1333
        %v1335 = vpop.f32.mrb[0].mxu0
        %1336 = vmatprep.mubr.bf16.mxu0 %v1114
        %1337 = vmatmul.mubr.bf16.gmra.mrb[0].mxu0 %v1113
        %v1338 = vpop.f32.mrb[0].mxu0
        %v1339 = vadd.f32 %v1174, %v1338
        %v1340 = vpop.f32.mrb[0].mxu0
        %v1341 = vpop.f32.mrb[0].mxu0
        %v1342 = vadd.f32 %v1174, %v1341
        %v1343 = vpop.f32.mrb[0].mxu0
        %1344 = vmatprep.mubr.bf16.mxu0 %v1116
        %1345 = vmatmul.mubr.bf16.gmra.mrb[0].mxu0 %v1115
        %v1346 = vpop.f32.mrb[0].mxu0
        %v1347 = vadd.f32 %v1174, %v1346
        %v1348 = vpop.f32.mrb[0].mxu0
        %v1349 = vpop.f32.mrb[0].mxu0
        %v1350 = vadd.f32 %v1174, %v1349
        %v1351 = vpop.f32.mrb[0].mxu0
        %1352 = vmatprep.mubr.bf16.mxu0 %v1118
        %1353 = vmatmul.mubr.bf16.gmra.mrb[0].mxu0 %v1117
        %v1354 = vpop.f32.mrb[0].mxu0
        %v1355 = vadd.f32 %v1174, %v1354
        %v1356 = vpop.f32.mrb[0].mxu0
        %v1357 = vpop.f32.mrb[0].mxu0
        %v1358 = vadd.f32 %v1174, %v1357
        %v1359 = vpop.f32.mrb[0].mxu0
        %1360 = vmatprep.mubr.bf16.mxu0 %v1120
        %1361 = vmatmul.mubr.bf16.gmra.mrb[0].mxu0 %v1119
        %v1362 = vpop.f32.mrb[0].mxu0
        %v1363 = vadd.f32 %v1174, %v1362
        %v1364 = vpop.f32.mrb[0].mxu0
        %v1365 = vpop.f32.mrb[0].mxu0
        %v1366 = vadd.f32 %v1174, %v1365
        %v1367 = vpop.f32.mrb[0].mxu0
        %1368 = vmatprep.mubr.bf16.mxu0 %v1122
        %1369 = vmatmul.mubr.bf16.gmra.mrb[0].mxu0 %v1121
        %v1370 = vpop.f32.mrb[0].mxu0
        %v1371 = vadd.f32 %v1174, %v1370
        %v1372 = vpop.f32.mrb[0].mxu0
        %v1373 = vpop.f32.mrb[0].mxu0
        %v1374 = vadd.f32 %v1174, %v1373
        %v1375 = vpop.f32.mrb[0].mxu0
        %1376 = vmatprep.mubr.bf16.mxu0 %v1124
        %1377 = vmatmul.mubr.bf16.gmra.mrb[0].mxu0 %v1123
        %v1378 = vpop.f32.mrb[0].mxu0
        %v1379 = vadd.f32 %v1174, %v1378
        %v1380 = vpop.f32.mrb[0].mxu0
        %v1381 = vpop.f32.mrb[0].mxu0
        %v1382 = vadd.f32 %v1174, %v1381
        %v1383 = vpop.f32.mrb[0].mxu0
        %1384 = vmatprep.mubr.bf16.mxu0 %v1126
        %1385 = vmatmul.mubr.bf16.gmra.mrb[0].mxu0 %v1125
        %v1386 = vpop.f32.mrb[0].mxu0
        %v1387 = vadd.f32 %v1174, %v1386
        %v1388 = vpop.f32.mrb[0].mxu0
        %v1389 = vpop.f32.mrb[0].mxu0
        %v1390 = vadd.f32 %v1174, %v1389
        %v1391 = vpop.f32.mrb[0].mxu0
        %1392 = vmatprep.mubr.bf16.mxu0 %v1128
        %1393 = vmatmul.mubr.bf16.gmra.mrb[0].mxu0 %v1127
        %v1394 = vpop.f32.mrb[0].mxu0
        %v1395 = vadd.f32 %v1174, %v1394
        %v1396 = vpop.f32.mrb[0].mxu0
        %v1397 = vpop.f32.mrb[0].mxu0
        %v1398 = vadd.f32 %v1174, %v1397
        %v1399 = vpop.f32.mrb[0].mxu0
        %1400 = vmatprep.mubr.bf16.mxu0 %v1130
        %1401 = vmatmul.mubr.bf16.gmra.mrb[0].mxu0 %v1129
        %v1402 = vpop.f32.mrb[0].mxu0
        %v1403 = vadd.f32 %v1174, %v1402
        %v1404 = vpop.f32.mrb[0].mxu0
        %v1405 = vpop.f32.mrb[0].mxu0
        %v1406 = vadd.f32 %v1174, %v1405
        %v1407 = vpop.f32.mrb[0].mxu0
        %1408 = vmatprep.mubr.bf16.mxu0 %v1132
        %1409 = vmatmul.mubr.bf16.gmra.mrb[0].mxu0 %v1131
        %v1410 = vpop.f32.mrb[0].mxu0
        %v1411 = vadd.f32 %v1174, %v1410
        %v1412 = vpop.f32.mrb[0].mxu0
        %v1413 = vpop.f32.mrb[0].mxu0
        %v1414 = vadd.f32 %v1174, %v1413
        %v1415 = vpop.f32.mrb[0].mxu0
        %1416 = vmatprep.mubr.bf16.mxu0 %v1134
        %1417 = vmatmul.mubr.bf16.gmra.mrb[0].mxu0 %v1133
        %v1418 = vpop.f32.mrb[0].mxu0
        %v1419 = vadd.f32 %v1174, %v1418
        %v1420 = vpop.f32.mrb[0].mxu0
        %v1421 = vpop.f32.mrb[0].mxu0
        %v1422 = vadd.f32 %v1174, %v1421
        %v1423 = vpop.f32.mrb[0].mxu0
        %1424 = vmatprep.mubr.bf16.mxu0 %v1136
        %1425 = vmatmul.mubr.bf16.gmra.mrb[0].mxu0 %v1135
        %v1426 = vpop.f32.mrb[0].mxu0
        %v1427 = vadd.f32 %v1174, %v1426
        %v1428 = vpop.f32.mrb[0].mxu0
        %v1429 = vpop.f32.mrb[0].mxu0
        %v1430 = vadd.f32 %v1174, %v1429
        %v1431 = vpop.f32.mrb[0].mxu0
        %1432 = vdwg.mxu0
        %1433 = vst [vmem:[%s440] sm:$0xff] %v1307
        %1434 = vst [vmem:[%s440 + $0x8] sm:$0xff] %v1310
        %1435 = vst [vmem:[%s440 + $0x10] sm:$0xff] %v1315
        %1436 = vst [vmem:[%s440 + $0x18] sm:$0xff] %v1318
        %1437 = vst [vmem:[%s440 + $0x20] sm:$0xff] %v1323
        %1438 = vst [vmem:[%s440 + $0x28] sm:$0xff] %v1326
        %1439 = vst [vmem:[%s440 + $0x30] sm:$0xff] %v1331
        %1440 = vst [vmem:[%s440 + $0x38] sm:$0xff] %v1334
        %1441 = vst [vmem:[%s440 + $0x40] sm:$0xff] %v1339
        %1442 = vst [vmem:[%s440 + $0x48] sm:$0xff] %v1342
        %1443 = vst [vmem:[%s440 + $0x50] sm:$0xff] %v1347
        %1444 = vst [vmem:[%s440 + $0x58] sm:$0xff] %v1350
        %1445 = vst [vmem:[%s440 + $0x60] sm:$0xff] %v1355
        %1446 = vst [vmem:[%s440 + $0x68] sm:$0xff] %v1358
        %1447 = vst [vmem:[%s440 + $0x70] sm:$0xff] %v1363
        %1448 = vst [vmem:[%s440 + $0x78] sm:$0xff] %v1366
        %1449 = vst [vmem:[%s440 + $0x80] sm:$0xff] %v1371
        %1450 = vst [vmem:[%s440 + $0x88] sm:$0xff] %v1374
        %1451 = vst [vmem:[%s440 + $0x90] sm:$0xff] %v1379
        %1452 = vst [vmem:[%s440 + $0x98] sm:$0xff] %v1382
        %1453 = vst [vmem:[%s440 + $0xa0] sm:$0xff] %v1387
        %1454 = vst [vmem:[%s440 + $0xa8] sm:$0xff] %v1390
        %1455 = vst [vmem:[%s440 + $0xb0] sm:$0xff] %v1395
        %1456 = vst [vmem:[%s440 + $0xb8] sm:$0xff] %v1398
        %1457 = vst [vmem:[%s440 + $0xc0] sm:$0xff] %v1403
        %1458 = vst [vmem:[%s440 + $0xc8] sm:$0xff] %v1406
        %1459 = vst [vmem:[%s440 + $0xd0] sm:$0xff] %v1411
        %1460 = vst [vmem:[%s440 + $0xd8] sm:$0xff] %v1414
        %1461 = vst [vmem:[%s440 + $0xe0] sm:$0xff] %v1419
        %1462 = vst [vmem:[%s440 + $0xe8] sm:$0xff] %v1422
        %1463 = vst [vmem:[%s440 + $0xf0] sm:$0xff] %v1427
        %1464 = vst [vmem:[%s440 + $0xf8] sm:$0xff] %v1430
        %v1465 = vpack.c.bf16 %v1310, %v1307
        %v1466 = vpack.c.bf16 %v1318, %v1315
        %v1467 = vpack.c.bf16 %v1326, %v1323
        %v1468 = vpack.c.bf16 %v1334, %v1331
        %v1469 = vpack.c.bf16 %v1342, %v1339
        %v1470 = vpack.c.bf16 %v1350, %v1347
        %v1471 = vpack.c.bf16 %v1358, %v1355
        %v1472 = vpack.c.bf16 %v1366, %v1363
        %v1473 = vpack.c.bf16 %v1374, %v1371
        %v1474 = vpack.c.bf16 %v1382, %v1379
        %v1475 = vpack.c.bf16 %v1390, %v1387
        %v1476 = vpack.c.bf16 %v1398, %v1395
        %v1477 = vpack.c.bf16 %v1406, %v1403
        %v1478 = vpack.c.bf16 %v1414, %v1411
        %v1479 = vpack.c.bf16 %v1422, %v1419
        %v1480 = vpack.c.bf16 %v1430, %v1427
        %v1481 = vld [vmem:[#allocation8] sm:$0xff]
        %v1482 = vld [vmem:[#allocation8 + $0x8] sm:$0xff]
        %v1483 = vld [vmem:[#allocation8 + $0x10] sm:$0xff]
        %v1484 = vld [vmem:[#allocation8 + $0x18] sm:$0xff]
        %v1485 = vld [vmem:[#allocation8 + $0x20] sm:$0xff]
        %v1486 = vld [vmem:[#allocation8 + $0x28] sm:$0xff]
        %v1487 = vld [vmem:[#allocation8 + $0x30] sm:$0xff]
        %v1488 = vld [vmem:[#allocation8 + $0x38] sm:$0xff]
        %v1489 = vld [vmem:[#allocation8 + $0x40] sm:$0xff]
        %v1490 = vld [vmem:[#allocation8 + $0x48] sm:$0xff]
        %v1491 = vld [vmem:[#allocation8 + $0x50] sm:$0xff]
        %v1492 = vld [vmem:[#allocation8 + $0x58] sm:$0xff]
        %v1493 = vld [vmem:[#allocation8 + $0x60] sm:$0xff]
        %v1494 = vld [vmem:[#allocation8 + $0x68] sm:$0xff]
        %v1495 = vld [vmem:[#allocation8 + $0x70] sm:$0xff]
        %v1496 = vld [vmem:[#allocation8 + $0x78] sm:$0xff]
        %v1497 = vld [vmem:[%s6] sm:$0x3]
        %v1499 = vlaneseq
        %v1500 = vshrl.u32 %v1499, 7
        %v1501 = vsub.s32 0, %v1500
        %v1502 = vrot.slane %v1497, %v1501
        %v1503 = vlaneseq
        %v1504 = vshrl.u32 %v1503, 7
        %v1505 = vsub.s32 1, %v1504
        %v1506 = vrot.slane %v1497, %v1505
        %v1525 = vunpack.c.l.b16 %v1481
        %v1526 = vunpack.c.h.b16 %v1481
        %v1527 = vunpack.c.l.b16 %v1482
        %v1528 = vunpack.c.h.b16 %v1482
        %v1529 = vunpack.c.l.b16 %v1483
        %v1530 = vunpack.c.h.b16 %v1483
        %v1531 = vunpack.c.l.b16 %v1484
        %v1532 = vunpack.c.h.b16 %v1484
        %v1533 = vunpack.c.l.b16 %v1485
        %v1534 = vunpack.c.h.b16 %v1485
        %v1535 = vunpack.c.l.b16 %v1486
        %v1536 = vunpack.c.h.b16 %v1486
        %v1537 = vunpack.c.l.b16 %v1487
        %v1538 = vunpack.c.h.b16 %v1487
        %v1539 = vunpack.c.l.b16 %v1488
        %v1540 = vunpack.c.h.b16 %v1488
        %v1541 = vunpack.c.l.b16 %v1489
        %v1542 = vunpack.c.h.b16 %v1489
        %v1543 = vunpack.c.l.b16 %v1490
        %v1544 = vunpack.c.h.b16 %v1490
        %v1545 = vunpack.c.l.b16 %v1491
        %v1546 = vunpack.c.h.b16 %v1491
        %v1547 = vunpack.c.l.b16 %v1492
        %v1548 = vunpack.c.h.b16 %v1492
        %v1549 = vunpack.c.l.b16 %v1493
        %v1550 = vunpack.c.h.b16 %v1493
        %v1551 = vunpack.c.l.b16 %v1494
        %v1552 = vunpack.c.h.b16 %v1494
        %v1553 = vunpack.c.l.b16 %v1495
        %v1554 = vunpack.c.h.b16 %v1495
        %v1555 = vunpack.c.l.b16 %v1496
        %v1556 = vunpack.c.h.b16 %v1496
        %v1557 = vpack.c.b16 %v1527, %v1525
        %v1558 = vpack.c.b16 %v1528, %v1526
        %v1559 = vpack.c.b16 %v1531, %v1529
        %v1560 = vpack.c.b16 %v1532, %v1530
        %v1561 = vpack.c.b16 %v1535, %v1533
        %v1562 = vpack.c.b16 %v1536, %v1534
        %v1563 = vpack.c.b16 %v1539, %v1537
        %v1564 = vpack.c.b16 %v1540, %v1538
        %v1565 = vpack.c.b16 %v1543, %v1541
        %v1566 = vpack.c.b16 %v1544, %v1542
        %v1567 = vpack.c.b16 %v1547, %v1545
        %v1568 = vpack.c.b16 %v1548, %v1546
        %v1569 = vpack.c.b16 %v1551, %v1549
        %v1570 = vpack.c.b16 %v1552, %v1550
        %v1571 = vpack.c.b16 %v1555, %v1553
        %v1572 = vpack.c.b16 %v1556, %v1554
        %1589 = vmatprep.subr.bf16.mxu0 %v1558
        %1590 = vmatpush1.bf16.msra.mxu0 %v1557
        %1591 = vmatprep.subr.bf16.mxu0 %v1560
        %1592 = vmatpush1.bf16.msra.mxu0 %v1559
        %1593 = vmatprep.subr.bf16.mxu0 %v1562
        %1594 = vmatpush1.bf16.msra.mxu0 %v1561
        %1595 = vmatprep.subr.bf16.mxu0 %v1564
        %1596 = vmatpush1.bf16.msra.mxu0 %v1563
        %1597 = vmatprep.subr.bf16.mxu0 %v1566
        %1598 = vmatpush1.bf16.msra.mxu0 %v1565
        %1599 = vmatprep.subr.bf16.mxu0 %v1568
        %1600 = vmatpush1.bf16.msra.mxu0 %v1567
        %1601 = vmatprep.subr.bf16.mxu0 %v1570
        %1602 = vmatpush1.bf16.msra.mxu0 %v1569
        %1603 = vmatprep.subr.bf16.mxu0 %v1572
        %1604 = vmatpush1.bf16.msra.mxu0 %v1571
        %1605 = vmatprep.subr.bf16.mxu0 0
        %1606 = vmatpush1.bf16.msra.mxu0 0
        %1607 = vmatprep.subr.bf16.mxu0 0
        %1608 = vmatpush1.bf16.msra.mxu0 0
        %1609 = vmatprep.subr.bf16.mxu0 0
        %1610 = vmatpush1.bf16.msra.mxu0 0
        %1611 = vmatprep.subr.bf16.mxu0 0
        %1612 = vmatpush1.bf16.msra.mxu0 0
        %1613 = vmatprep.subr.bf16.mxu0 0
        %1614 = vmatpush1.bf16.msra.mxu0 0
        %1615 = vmatprep.subr.bf16.mxu0 0
        %1616 = vmatpush1.bf16.msra.mxu0 0
        %1617 = vmatprep.subr.bf16.mxu0 0
        %1618 = vmatpush1.bf16.msra.mxu0 0
        %1619 = vmatprep.subr.bf16.mxu0 0
        %1620 = vmatpush1.bf16.msra.mxu0 0
        %1621 = vmatprep.mubr.bf16.mxu0 0
        %1622 = vmatmul.mubr.bf16.gmra.mrb[0].mxu0 %v1465
        %v1623 = vpop.f32.mrb[0].mxu0
        %v1624 = vadd.f32 %v1502, %v1623
        %v1625 = vpop.f32.mrb[0].mxu0
        %v1626 = vadd.f32 %v1506, %v1625
        %v1627 = vpop.f32.mrb[0].mxu0
        %v1628 = vadd.f32 %v1502, %v1627
        %v1629 = vpop.f32.mrb[0].mxu0
        %v1630 = vadd.f32 %v1506, %v1629
        %1631 = vmatprep.mubr.bf16.mxu0 0
        %1632 = vmatmul.mubr.bf16.gmra.mrb[0].mxu0 %v1466
        %v1633 = vpop.f32.mrb[0].mxu0
        %v1634 = vadd.f32 %v1502, %v1633
        %v1635 = vpop.f32.mrb[0].mxu0
        %v1636 = vadd.f32 %v1506, %v1635
        %v1637 = vpop.f32.mrb[0].mxu0
        %v1638 = vadd.f32 %v1502, %v1637
        %v1639 = vpop.f32.mrb[0].mxu0
        %v1640 = vadd.f32 %v1506, %v1639
        %1641 = vmatprep.mubr.bf16.mxu0 0
        %1642 = vmatmul.mubr.bf16.gmra.mrb[0].mxu0 %v1467
        %v1643 = vpop.f32.mrb[0].mxu0
        %v1644 = vadd.f32 %v1502, %v1643
        %v1645 = vpop.f32.mrb[0].mxu0
        %v1646 = vadd.f32 %v1506, %v1645
        %v1647 = vpop.f32.mrb[0].mxu0
        %v1648 = vadd.f32 %v1502, %v1647
        %v1649 = vpop.f32.mrb[0].mxu0
        %v1650 = vadd.f32 %v1506, %v1649
        %1651 = vmatprep.mubr.bf16.mxu0 0
        %1652 = vmatmul.mubr.bf16.gmra.mrb[0].mxu0 %v1468
        %v1653 = vpop.f32.mrb[0].mxu0
        %v1654 = vadd.f32 %v1502, %v1653
        %v1655 = vpop.f32.mrb[0].mxu0
        %v1656 = vadd.f32 %v1506, %v1655
        %v1657 = vpop.f32.mrb[0].mxu0
        %v1658 = vadd.f32 %v1502, %v1657
        %v1659 = vpop.f32.mrb[0].mxu0
        %v1660 = vadd.f32 %v1506, %v1659
        %1661 = vmatprep.mubr.bf16.mxu0 0
        %1662 = vmatmul.mubr.bf16.gmra.mrb[0].mxu0 %v1469
        %v1663 = vpop.f32.mrb[0].mxu0
        %v1664 = vadd.f32 %v1502, %v1663
        %v1665 = vpop.f32.mrb[0].mxu0
        %v1666 = vadd.f32 %v1506, %v1665
        %v1667 = vpop.f32.mrb[0].mxu0
        %v1668 = vadd.f32 %v1502, %v1667
        %v1669 = vpop.f32.mrb[0].mxu0
        %v1670 = vadd.f32 %v1506, %v1669
        %1671 = vmatprep.mubr.bf16.mxu0 0
        %1672 = vmatmul.mubr.bf16.gmra.mrb[0].mxu0 %v1470
        %v1673 = vpop.f32.mrb[0].mxu0
        %v1674 = vadd.f32 %v1502, %v1673
        %v1675 = vpop.f32.mrb[0].mxu0
        %v1676 = vadd.f32 %v1506, %v1675
        %v1677 = vpop.f32.mrb[0].mxu0
        %v1678 = vadd.f32 %v1502, %v1677
        %v1679 = vpop.f32.mrb[0].mxu0
        %v1680 = vadd.f32 %v1506, %v1679
        %1681 = vmatprep.mubr.bf16.mxu0 0
        %1682 = vmatmul.mubr.bf16.gmra.mrb[0].mxu0 %v1471
        %v1683 = vpop.f32.mrb[0].mxu0
        %v1684 = vadd.f32 %v1502, %v1683
        %v1685 = vpop.f32.mrb[0].mxu0
        %v1686 = vadd.f32 %v1506, %v1685
        %v1687 = vpop.f32.mrb[0].mxu0
        %v1688 = vadd.f32 %v1502, %v1687
        %v1689 = vpop.f32.mrb[0].mxu0
        %v1690 = vadd.f32 %v1506, %v1689
        %1691 = vmatprep.mubr.bf16.mxu0 0
        %1692 = vmatmul.mubr.bf16.gmra.mrb[0].mxu0 %v1472
        %v1693 = vpop.f32.mrb[0].mxu0
        %v1694 = vadd.f32 %v1502, %v1693
        %v1695 = vpop.f32.mrb[0].mxu0
        %v1696 = vadd.f32 %v1506, %v1695
        %v1697 = vpop.f32.mrb[0].mxu0
        %v1698 = vadd.f32 %v1502, %v1697
        %v1699 = vpop.f32.mrb[0].mxu0
        %v1700 = vadd.f32 %v1506, %v1699
        %1701 = vmatprep.mubr.bf16.mxu0 0
        %1702 = vmatmul.mubr.bf16.gmra.mrb[0].mxu0 %v1473
        %v1703 = vpop.f32.mrb[0].mxu0
        %v1704 = vadd.f32 %v1502, %v1703
        %v1705 = vpop.f32.mrb[0].mxu0
        %v1706 = vadd.f32 %v1506, %v1705
        %v1707 = vpop.f32.mrb[0].mxu0
        %v1708 = vadd.f32 %v1502, %v1707
        %v1709 = vpop.f32.mrb[0].mxu0
        %v1710 = vadd.f32 %v1506, %v1709
        %1711 = vmatprep.mubr.bf16.mxu0 0
        %1712 = vmatmul.mubr.bf16.gmra.mrb[0].mxu0 %v1474
        %v1713 = vpop.f32.mrb[0].mxu0
        %v1714 = vadd.f32 %v1502, %v1713
        %v1715 = vpop.f32.mrb[0].mxu0
        %v1716 = vadd.f32 %v1506, %v1715
        %v1717 = vpop.f32.mrb[0].mxu0
        %v1718 = vadd.f32 %v1502, %v1717
        %v1719 = vpop.f32.mrb[0].mxu0
        %v1720 = vadd.f32 %v1506, %v1719
        %1721 = vmatprep.mubr.bf16.mxu0 0
        %1722 = vmatmul.mubr.bf16.gmra.mrb[0].mxu0 %v1475
        %v1723 = vpop.f32.mrb[0].mxu0
        %v1724 = vadd.f32 %v1502, %v1723
        %v1725 = vpop.f32.mrb[0].mxu0
        %v1726 = vadd.f32 %v1506, %v1725
        %v1727 = vpop.f32.mrb[0].mxu0
        %v1728 = vadd.f32 %v1502, %v1727
        %v1729 = vpop.f32.mrb[0].mxu0
        %v1730 = vadd.f32 %v1506, %v1729
        %1731 = vmatprep.mubr.bf16.mxu0 0
        %1732 = vmatmul.mubr.bf16.gmra.mrb[0].mxu0 %v1476
        %v1733 = vpop.f32.mrb[0].mxu0
        %v1734 = vadd.f32 %v1502, %v1733
        %v1735 = vpop.f32.mrb[0].mxu0
        %v1736 = vadd.f32 %v1506, %v1735
        %v1737 = vpop.f32.mrb[0].mxu0
        %v1738 = vadd.f32 %v1502, %v1737
        %v1739 = vpop.f32.mrb[0].mxu0
        %v1740 = vadd.f32 %v1506, %v1739
        %1741 = vmatprep.mubr.bf16.mxu0 0
        %1742 = vmatmul.mubr.bf16.gmra.mrb[0].mxu0 %v1477
        %v1743 = vpop.f32.mrb[0].mxu0
        %v1744 = vadd.f32 %v1502, %v1743
        %v1745 = vpop.f32.mrb[0].mxu0
        %v1746 = vadd.f32 %v1506, %v1745
        %v1747 = vpop.f32.mrb[0].mxu0
        %v1748 = vadd.f32 %v1502, %v1747
        %v1749 = vpop.f32.mrb[0].mxu0
        %v1750 = vadd.f32 %v1506, %v1749
        %1751 = vmatprep.mubr.bf16.mxu0 0
        %1752 = vmatmul.mubr.bf16.gmra.mrb[0].mxu0 %v1478
        %v1753 = vpop.f32.mrb[0].mxu0
        %v1754 = vadd.f32 %v1502, %v1753
        %v1755 = vpop.f32.mrb[0].mxu0
        %v1756 = vadd.f32 %v1506, %v1755
        %v1757 = vpop.f32.mrb[0].mxu0
        %v1758 = vadd.f32 %v1502, %v1757
        %v1759 = vpop.f32.mrb[0].mxu0
        %v1760 = vadd.f32 %v1506, %v1759
        %1761 = vmatprep.mubr.bf16.mxu0 0
        %1762 = vmatmul.mubr.bf16.gmra.mrb[0].mxu0 %v1479
        %v1763 = vpop.f32.mrb[0].mxu0
        %v1764 = vadd.f32 %v1502, %v1763
        %v1765 = vpop.f32.mrb[0].mxu0
        %v1766 = vadd.f32 %v1506, %v1765
        %v1767 = vpop.f32.mrb[0].mxu0
        %v1768 = vadd.f32 %v1502, %v1767
        %v1769 = vpop.f32.mrb[0].mxu0
        %v1770 = vadd.f32 %v1506, %v1769
        %1771 = vmatprep.mubr.bf16.mxu0 0
        %1772 = vmatmul.mubr.bf16.gmra.mrb[0].mxu0 %v1480
        %v1773 = vpop.f32.mrb[0].mxu0
        %v1774 = vadd.f32 %v1502, %v1773
        %v1775 = vpop.f32.mrb[0].mxu0
        %v1776 = vadd.f32 %v1506, %v1775
        %v1777 = vpop.f32.mrb[0].mxu0
        %v1778 = vadd.f32 %v1502, %v1777
        %v1779 = vpop.f32.mrb[0].mxu0
        %v1780 = vadd.f32 %v1506, %v1779
        %1781 = vdwg.mxu0
        %v1782 = vmax.f32 %v1624, 0.0
        %v1783 = vmax.f32 %v1626, 0.0
        %v1784 = vmax.f32 %v1628, 0.0
        %v1785 = vmax.f32 %v1630, 0.0
        %v1786 = vmax.f32 %v1634, 0.0
        %v1787 = vmax.f32 %v1636, 0.0
        %v1788 = vmax.f32 %v1638, 0.0
        %v1789 = vmax.f32 %v1640, 0.0
        %v1790 = vmax.f32 %v1644, 0.0
        %v1791 = vmax.f32 %v1646, 0.0
        %v1792 = vmax.f32 %v1648, 0.0
        %v1793 = vmax.f32 %v1650, 0.0
        %v1794 = vmax.f32 %v1654, 0.0
        %v1795 = vmax.f32 %v1656, 0.0
        %v1796 = vmax.f32 %v1658, 0.0
        %v1797 = vmax.f32 %v1660, 0.0
        %v1798 = vmax.f32 %v1664, 0.0
        %v1799 = vmax.f32 %v1666, 0.0
        %v1800 = vmax.f32 %v1668, 0.0
        %v1801 = vmax.f32 %v1670, 0.0
        %v1802 = vmax.f32 %v1674, 0.0
        %v1803 = vmax.f32 %v1676, 0.0
        %v1804 = vmax.f32 %v1678, 0.0
        %v1805 = vmax.f32 %v1680, 0.0
        %v1806 = vmax.f32 %v1684, 0.0
        %v1807 = vmax.f32 %v1686, 0.0
        %v1808 = vmax.f32 %v1688, 0.0
        %v1809 = vmax.f32 %v1690, 0.0
        %v1810 = vmax.f32 %v1694, 0.0
        %v1811 = vmax.f32 %v1696, 0.0
        %v1812 = vmax.f32 %v1698, 0.0
        %v1813 = vmax.f32 %v1700, 0.0
        %v1814 = vmax.f32 %v1704, 0.0
        %v1815 = vmax.f32 %v1706, 0.0
        %v1816 = vmax.f32 %v1708, 0.0
        %v1817 = vmax.f32 %v1710, 0.0
        %v1818 = vmax.f32 %v1714, 0.0
        %v1819 = vmax.f32 %v1716, 0.0
        %v1820 = vmax.f32 %v1718, 0.0
        %v1821 = vmax.f32 %v1720, 0.0
        %v1822 = vmax.f32 %v1724, 0.0
        %v1823 = vmax.f32 %v1726, 0.0
        %v1824 = vmax.f32 %v1728, 0.0
        %v1825 = vmax.f32 %v1730, 0.0
        %v1826 = vmax.f32 %v1734, 0.0
        %v1827 = vmax.f32 %v1736, 0.0
        %v1828 = vmax.f32 %v1738, 0.0
        %v1829 = vmax.f32 %v1740, 0.0
        %v1830 = vmax.f32 %v1744, 0.0
        %v1831 = vmax.f32 %v1746, 0.0
        %v1832 = vmax.f32 %v1748, 0.0
        %v1833 = vmax.f32 %v1750, 0.0
        %v1834 = vmax.f32 %v1754, 0.0
        %v1835 = vmax.f32 %v1756, 0.0
        %v1836 = vmax.f32 %v1758, 0.0
        %v1837 = vmax.f32 %v1760, 0.0
        %v1838 = vmax.f32 %v1764, 0.0
        %v1839 = vmax.f32 %v1766, 0.0
        %v1840 = vmax.f32 %v1768, 0.0
        %v1841 = vmax.f32 %v1770, 0.0
        %v1842 = vmax.f32 %v1774, 0.0
        %v1843 = vmax.f32 %v1776, 0.0
        %v1844 = vmax.f32 %v1778, 0.0
        %v1845 = vmax.f32 %v1780, 0.0
        %v1846 = vpack.c.bf16 %v1784, %v1782
        %v1847 = vpack.c.bf16 %v1785, %v1783
        %v1848 = vpack.c.bf16 %v1788, %v1786
        %v1849 = vpack.c.bf16 %v1789, %v1787
        %v1850 = vpack.c.bf16 %v1792, %v1790
        %v1851 = vpack.c.bf16 %v1793, %v1791
        %v1852 = vpack.c.bf16 %v1796, %v1794
        %v1853 = vpack.c.bf16 %v1797, %v1795
        %v1854 = vpack.c.bf16 %v1800, %v1798
        %v1855 = vpack.c.bf16 %v1801, %v1799
        %v1856 = vpack.c.bf16 %v1804, %v1802
        %v1857 = vpack.c.bf16 %v1805, %v1803
        %v1858 = vpack.c.bf16 %v1808, %v1806
        %v1859 = vpack.c.bf16 %v1809, %v1807
        %v1860 = vpack.c.bf16 %v1812, %v1810
        %v1861 = vpack.c.bf16 %v1813, %v1811
        %v1862 = vpack.c.bf16 %v1816, %v1814
        %v1863 = vpack.c.bf16 %v1817, %v1815
        %v1864 = vpack.c.bf16 %v1820, %v1818
        %v1865 = vpack.c.bf16 %v1821, %v1819
        %v1866 = vpack.c.bf16 %v1824, %v1822
        %v1867 = vpack.c.bf16 %v1825, %v1823
        %v1868 = vpack.c.bf16 %v1828, %v1826
        %v1869 = vpack.c.bf16 %v1829, %v1827
        %v1870 = vpack.c.bf16 %v1832, %v1830
        %v1871 = vpack.c.bf16 %v1833, %v1831
        %v1872 = vpack.c.bf16 %v1836, %v1834
        %v1873 = vpack.c.bf16 %v1837, %v1835
        %v1874 = vpack.c.bf16 %v1840, %v1838
        %v1875 = vpack.c.bf16 %v1841, %v1839
        %v1876 = vpack.c.bf16 %v1844, %v1842
        %v1877 = vpack.c.bf16 %v1845, %v1843
        %v1878 = vld [vmem:[#allocation10] sm:$0xff]
        %v1879 = vld [vmem:[#allocation10 + $0x8] sm:$0xff]
        %v1880 = vld [vmem:[#allocation10 + $0x10] sm:$0xff]
        %v1881 = vld [vmem:[#allocation10 + $0x18] sm:$0xff]
        %v1882 = vld [vmem:[#allocation10 + $0x20] sm:$0xff]
        %v1883 = vld [vmem:[#allocation10 + $0x28] sm:$0xff]
        %v1884 = vld [vmem:[#allocation10 + $0x30] sm:$0xff]
        %v1885 = vld [vmem:[#allocation10 + $0x38] sm:$0xff]
        %v1886 = vld [vmem:[#allocation10 + $0x40] sm:$0xff]
        %v1887 = vld [vmem:[#allocation10 + $0x48] sm:$0xff]
        %v1888 = vld [vmem:[#allocation10 + $0x50] sm:$0xff]
        %v1889 = vld [vmem:[#allocation10 + $0x58] sm:$0xff]
        %v1890 = vld [vmem:[#allocation10 + $0x60] sm:$0xff]
        %v1891 = vld [vmem:[#allocation10 + $0x68] sm:$0xff]
        %v1892 = vld [vmem:[#allocation10 + $0x70] sm:$0xff]
        %v1893 = vld [vmem:[#allocation10 + $0x78] sm:$0xff]
        %v1894 = vld [vmem:[#allocation10 + $0x80] sm:$0xff]
        %v1895 = vld [vmem:[#allocation10 + $0x88] sm:$0xff]
        %v1896 = vld [vmem:[#allocation10 + $0x90] sm:$0xff]
        %v1897 = vld [vmem:[#allocation10 + $0x98] sm:$0xff]
        %v1898 = vld [vmem:[#allocation10 + $0xa0] sm:$0xff]
        %v1899 = vld [vmem:[#allocation10 + $0xa8] sm:$0xff]
        %v1900 = vld [vmem:[#allocation10 + $0xb0] sm:$0xff]
        %v1901 = vld [vmem:[#allocation10 + $0xb8] sm:$0xff]
        %v1902 = vld [vmem:[#allocation10 + $0xc0] sm:$0xff]
        %v1903 = vld [vmem:[#allocation10 + $0xc8] sm:$0xff]
        %v1904 = vld [vmem:[#allocation10 + $0xd0] sm:$0xff]
        %v1905 = vld [vmem:[#allocation10 + $0xd8] sm:$0xff]
        %v1906 = vld [vmem:[#allocation10 + $0xe0] sm:$0xff]
        %v1907 = vld [vmem:[#allocation10 + $0xe8] sm:$0xff]
        %v1908 = vld [vmem:[#allocation10 + $0xf0] sm:$0xff]
        %v1909 = vld [vmem:[#allocation10 + $0xf8] sm:$0xff]
        %v1910 = vld [vmem:[%s8] sm:$0x3]
        %v1912 = vlaneseq
        %v1913 = vshrl.u32 %v1912, 7
        %v1914 = vsub.s32 0, %v1913
        %v1915 = vrot.slane %v1910, %v1914
        %v1916 = vlaneseq
        %v1917 = vshrl.u32 %v1916, 7
        %v1918 = vsub.s32 1, %v1917
        %v1919 = vrot.slane %v1910, %v1918
        %v1954 = vunpack.c.l.b16 %v1878
        %v1955 = vunpack.c.h.b16 %v1878
        %v1956 = vunpack.c.l.b16 %v1879
        %v1957 = vunpack.c.h.b16 %v1879
        %v1958 = vunpack.c.l.b16 %v1880
        %v1959 = vunpack.c.h.b16 %v1880
        %v1960 = vunpack.c.l.b16 %v1881
        %v1961 = vunpack.c.h.b16 %v1881
        %v1962 = vunpack.c.l.b16 %v1882
        %v1963 = vunpack.c.h.b16 %v1882
        %v1964 = vunpack.c.l.b16 %v1883
        %v1965 = vunpack.c.h.b16 %v1883
        %v1966 = vunpack.c.l.b16 %v1884
        %v1967 = vunpack.c.h.b16 %v1884
        %v1968 = vunpack.c.l.b16 %v1885
        %v1969 = vunpack.c.h.b16 %v1885
        %v1970 = vunpack.c.l.b16 %v1886
        %v1971 = vunpack.c.h.b16 %v1886
        %v1972 = vunpack.c.l.b16 %v1887
        %v1973 = vunpack.c.h.b16 %v1887
        %v1974 = vunpack.c.l.b16 %v1888
        %v1975 = vunpack.c.h.b16 %v1888
        %v1976 = vunpack.c.l.b16 %v1889
        %v1977 = vunpack.c.h.b16 %v1889
        %v1978 = vunpack.c.l.b16 %v1890
        %v1979 = vunpack.c.h.b16 %v1890
        %v1980 = vunpack.c.l.b16 %v1891
        %v1981 = vunpack.c.h.b16 %v1891
        %v1982 = vunpack.c.l.b16 %v1892
        %v1983 = vunpack.c.h.b16 %v1892
        %v1984 = vunpack.c.l.b16 %v1893
        %v1985 = vunpack.c.h.b16 %v1893
        %v1986 = vunpack.c.l.b16 %v1894
        %v1987 = vunpack.c.h.b16 %v1894
        %v1988 = vunpack.c.l.b16 %v1895
        %v1989 = vunpack.c.h.b16 %v1895
        %v1990 = vunpack.c.l.b16 %v1896
        %v1991 = vunpack.c.h.b16 %v1896
        %v1992 = vunpack.c.l.b16 %v1897
        %v1993 = vunpack.c.h.b16 %v1897
        %v1994 = vunpack.c.l.b16 %v1898
        %v1995 = vunpack.c.h.b16 %v1898
        %v1996 = vunpack.c.l.b16 %v1899
        %v1997 = vunpack.c.h.b16 %v1899
        %v1998 = vunpack.c.l.b16 %v1900
        %v1999 = vunpack.c.h.b16 %v1900
        %v2000 = vunpack.c.l.b16 %v1901
        %v2001 = vunpack.c.h.b16 %v1901
        %v2002 = vunpack.c.l.b16 %v1902
        %v2003 = vunpack.c.h.b16 %v1902
        %v2004 = vunpack.c.l.b16 %v1903
        %v2005 = vunpack.c.h.b16 %v1903
        %v2006 = vunpack.c.l.b16 %v1904
        %v2007 = vunpack.c.h.b16 %v1904
        %v2008 = vunpack.c.l.b16 %v1905
        %v2009 = vunpack.c.h.b16 %v1905
        %v2010 = vunpack.c.l.b16 %v1906
        %v2011 = vunpack.c.h.b16 %v1906
        %v2012 = vunpack.c.l.b16 %v1907
        %v2013 = vunpack.c.h.b16 %v1907
        %v2014 = vunpack.c.l.b16 %v1908
        %v2015 = vunpack.c.h.b16 %v1908
        %v2016 = vunpack.c.l.b16 %v1909
        %v2017 = vunpack.c.h.b16 %v1909
        %v2018 = vpack.c.b16 %v1956, %v1954
        %v2019 = vpack.c.b16 %v1957, %v1955
        %v2020 = vpack.c.b16 %v1960, %v1958
        %v2021 = vpack.c.b16 %v1961, %v1959
        %v2022 = vpack.c.b16 %v1964, %v1962
        %v2023 = vpack.c.b16 %v1965, %v1963
        %v2024 = vpack.c.b16 %v1968, %v1966
        %v2025 = vpack.c.b16 %v1969, %v1967
        %v2026 = vpack.c.b16 %v1972, %v1970
        %v2027 = vpack.c.b16 %v1973, %v1971
        %v2028 = vpack.c.b16 %v1976, %v1974
        %v2029 = vpack.c.b16 %v1977, %v1975
        %v2030 = vpack.c.b16 %v1980, %v1978
        %v2031 = vpack.c.b16 %v1981, %v1979
        %v2032 = vpack.c.b16 %v1984, %v1982
        %v2033 = vpack.c.b16 %v1985, %v1983
        %v2034 = vpack.c.b16 %v1988, %v1986
        %v2035 = vpack.c.b16 %v1989, %v1987
        %v2036 = vpack.c.b16 %v1992, %v1990
        %v2037 = vpack.c.b16 %v1993, %v1991
        %v2038 = vpack.c.b16 %v1996, %v1994
        %v2039 = vpack.c.b16 %v1997, %v1995
        %v2040 = vpack.c.b16 %v2000, %v1998
        %v2041 = vpack.c.b16 %v2001, %v1999
        %v2042 = vpack.c.b16 %v2004, %v2002
        %v2043 = vpack.c.b16 %v2005, %v2003
        %v2044 = vpack.c.b16 %v2008, %v2006
        %v2045 = vpack.c.b16 %v2009, %v2007
        %v2046 = vpack.c.b16 %v2012, %v2010
        %v2047 = vpack.c.b16 %v2013, %v2011
        %v2048 = vpack.c.b16 %v2016, %v2014
        %v2049 = vpack.c.b16 %v2017, %v2015
        %2082 = vmatprep.subr.bf16.mxu0 %v2019
        %2083 = vmatpush1.bf16.msra.mxu0 %v2018
        %2084 = vmatprep.subr.bf16.mxu0 %v2021
        %2085 = vmatpush1.bf16.msra.mxu0 %v2020
        %2086 = vmatprep.subr.bf16.mxu0 %v2023
        %2087 = vmatpush1.bf16.msra.mxu0 %v2022
        %2088 = vmatprep.subr.bf16.mxu0 %v2025
        %2089 = vmatpush1.bf16.msra.mxu0 %v2024
        %2090 = vmatprep.subr.bf16.mxu0 %v2027
        %2091 = vmatpush1.bf16.msra.mxu0 %v2026
        %2092 = vmatprep.subr.bf16.mxu0 %v2029
        %2093 = vmatpush1.bf16.msra.mxu0 %v2028
        %2094 = vmatprep.subr.bf16.mxu0 %v2031
        %2095 = vmatpush1.bf16.msra.mxu0 %v2030
        %2096 = vmatprep.subr.bf16.mxu0 %v2033
        %2097 = vmatpush1.bf16.msra.mxu0 %v2032
        %2098 = vmatprep.subr.bf16.mxu0 %v2035
        %2099 = vmatpush1.bf16.msra.mxu0 %v2034
        %2100 = vmatprep.subr.bf16.mxu0 %v2037
        %2101 = vmatpush1.bf16.msra.mxu0 %v2036
        %2102 = vmatprep.subr.bf16.mxu0 %v2039
        %2103 = vmatpush1.bf16.msra.mxu0 %v2038
        %2104 = vmatprep.subr.bf16.mxu0 %v2041
        %2105 = vmatpush1.bf16.msra.mxu0 %v2040
        %2106 = vmatprep.subr.bf16.mxu0 %v2043
        %2107 = vmatpush1.bf16.msra.mxu0 %v2042
        %2108 = vmatprep.subr.bf16.mxu0 %v2045
        %2109 = vmatpush1.bf16.msra.mxu0 %v2044
        %2110 = vmatprep.subr.bf16.mxu0 %v2047
        %2111 = vmatpush1.bf16.msra.mxu0 %v2046
        %2112 = vmatprep.subr.bf16.mxu0 %v2049
        %2113 = vmatpush1.bf16.msra.mxu0 %v2048
        %2114 = vmatprep.mubr.bf16.mxu0 %v1847
        %2115 = vmatmul.mubr.bf16.gmra.mrb[0].mxu0 %v1846
        %v2116 = vpop.f32.mrb[0].mxu0
        %v2117 = vadd.f32 %v1915, %v2116
        %v2118 = vpop.f32.mrb[0].mxu0
        %v2119 = vadd.f32 %v1919, %v2118
        %v2120 = vpop.f32.mrb[0].mxu0
        %v2121 = vadd.f32 %v1915, %v2120
        %v2122 = vpop.f32.mrb[0].mxu0
        %v2123 = vadd.f32 %v1919, %v2122
        %2124 = vmatprep.mubr.bf16.mxu0 %v1849
        %2125 = vmatmul.mubr.bf16.gmra.mrb[0].mxu0 %v1848
        %v2126 = vpop.f32.mrb[0].mxu0
        %v2127 = vadd.f32 %v1915, %v2126
        %v2128 = vpop.f32.mrb[0].mxu0
        %v2129 = vadd.f32 %v1919, %v2128
        %v2130 = vpop.f32.mrb[0].mxu0
        %v2131 = vadd.f32 %v1915, %v2130
        %v2132 = vpop.f32.mrb[0].mxu0
        %v2133 = vadd.f32 %v1919, %v2132
        %2134 = vmatprep.mubr.bf16.mxu0 %v1851
        %2135 = vmatmul.mubr.bf16.gmra.mrb[0].mxu0 %v1850
        %v2136 = vpop.f32.mrb[0].mxu0
        %v2137 = vadd.f32 %v1915, %v2136
        %v2138 = vpop.f32.mrb[0].mxu0
        %v2139 = vadd.f32 %v1919, %v2138
        %v2140 = vpop.f32.mrb[0].mxu0
        %v2141 = vadd.f32 %v1915, %v2140
        %v2142 = vpop.f32.mrb[0].mxu0
        %v2143 = vadd.f32 %v1919, %v2142
        %2144 = vmatprep.mubr.bf16.mxu0 %v1853
        %2145 = vmatmul.mubr.bf16.gmra.mrb[0].mxu0 %v1852
        %v2146 = vpop.f32.mrb[0].mxu0
        %v2147 = vadd.f32 %v1915, %v2146
        %v2148 = vpop.f32.mrb[0].mxu0
        %v2149 = vadd.f32 %v1919, %v2148
        %v2150 = vpop.f32.mrb[0].mxu0
        %v2151 = vadd.f32 %v1915, %v2150
        %v2152 = vpop.f32.mrb[0].mxu0
        %v2153 = vadd.f32 %v1919, %v2152
        %2154 = vmatprep.mubr.bf16.mxu0 %v1855
        %2155 = vmatmul.mubr.bf16.gmra.mrb[0].mxu0 %v1854
        %v2156 = vpop.f32.mrb[0].mxu0
        %v2157 = vadd.f32 %v1915, %v2156
        %v2158 = vpop.f32.mrb[0].mxu0
        %v2159 = vadd.f32 %v1919, %v2158
        %v2160 = vpop.f32.mrb[0].mxu0
        %v2161 = vadd.f32 %v1915, %v2160
        %v2162 = vpop.f32.mrb[0].mxu0
        %v2163 = vadd.f32 %v1919, %v2162
        %2164 = vmatprep.mubr.bf16.mxu0 %v1857
        %2165 = vmatmul.mubr.bf16.gmra.mrb[0].mxu0 %v1856
        %v2166 = vpop.f32.mrb[0].mxu0
        %v2167 = vadd.f32 %v1915, %v2166
        %v2168 = vpop.f32.mrb[0].mxu0
        %v2169 = vadd.f32 %v1919, %v2168
        %v2170 = vpop.f32.mrb[0].mxu0
        %v2171 = vadd.f32 %v1915, %v2170
        %v2172 = vpop.f32.mrb[0].mxu0
        %v2173 = vadd.f32 %v1919, %v2172
        %2174 = vmatprep.mubr.bf16.mxu0 %v1859
        %2175 = vmatmul.mubr.bf16.gmra.mrb[0].mxu0 %v1858
        %v2176 = vpop.f32.mrb[0].mxu0
        %v2177 = vadd.f32 %v1915, %v2176
        %v2178 = vpop.f32.mrb[0].mxu0
        %v2179 = vadd.f32 %v1919, %v2178
        %v2180 = vpop.f32.mrb[0].mxu0
        %v2181 = vadd.f32 %v1915, %v2180
        %v2182 = vpop.f32.mrb[0].mxu0
        %v2183 = vadd.f32 %v1919, %v2182
        %2184 = vmatprep.mubr.bf16.mxu0 %v1861
        %2185 = vmatmul.mubr.bf16.gmra.mrb[0].mxu0 %v1860
        %v2186 = vpop.f32.mrb[0].mxu0
        %v2187 = vadd.f32 %v1915, %v2186
        %v2188 = vpop.f32.mrb[0].mxu0
        %v2189 = vadd.f32 %v1919, %v2188
        %v2190 = vpop.f32.mrb[0].mxu0
        %v2191 = vadd.f32 %v1915, %v2190
        %v2192 = vpop.f32.mrb[0].mxu0
        %v2193 = vadd.f32 %v1919, %v2192
        %2194 = vmatprep.mubr.bf16.mxu0 %v1863
        %2195 = vmatmul.mubr.bf16.gmra.mrb[0].mxu0 %v1862
        %v2196 = vpop.f32.mrb[0].mxu0
        %v2197 = vadd.f32 %v1915, %v2196
        %v2198 = vpop.f32.mrb[0].mxu0
        %v2199 = vadd.f32 %v1919, %v2198
        %v2200 = vpop.f32.mrb[0].mxu0
        %v2201 = vadd.f32 %v1915, %v2200
        %v2202 = vpop.f32.mrb[0].mxu0
        %v2203 = vadd.f32 %v1919, %v2202
        %2204 = vmatprep.mubr.bf16.mxu0 %v1865
        %2205 = vmatmul.mubr.bf16.gmra.mrb[0].mxu0 %v1864
        %v2206 = vpop.f32.mrb[0].mxu0
        %v2207 = vadd.f32 %v1915, %v2206
        %v2208 = vpop.f32.mrb[0].mxu0
        %v2209 = vadd.f32 %v1919, %v2208
        %v2210 = vpop.f32.mrb[0].mxu0
        %v2211 = vadd.f32 %v1915, %v2210
        %v2212 = vpop.f32.mrb[0].mxu0
        %v2213 = vadd.f32 %v1919, %v2212
        %2214 = vmatprep.mubr.bf16.mxu0 %v1867
        %2215 = vmatmul.mubr.bf16.gmra.mrb[0].mxu0 %v1866
        %v2216 = vpop.f32.mrb[0].mxu0
        %v2217 = vadd.f32 %v1915, %v2216
        %v2218 = vpop.f32.mrb[0].mxu0
        %v2219 = vadd.f32 %v1919, %v2218
        %v2220 = vpop.f32.mrb[0].mxu0
        %v2221 = vadd.f32 %v1915, %v2220
        %v2222 = vpop.f32.mrb[0].mxu0
        %v2223 = vadd.f32 %v1919, %v2222
        %2224 = vmatprep.mubr.bf16.mxu0 %v1869
        %2225 = vmatmul.mubr.bf16.gmra.mrb[0].mxu0 %v1868
        %v2226 = vpop.f32.mrb[0].mxu0
        %v2227 = vadd.f32 %v1915, %v2226
        %v2228 = vpop.f32.mrb[0].mxu0
        %v2229 = vadd.f32 %v1919, %v2228
        %v2230 = vpop.f32.mrb[0].mxu0
        %v2231 = vadd.f32 %v1915, %v2230
        %v2232 = vpop.f32.mrb[0].mxu0
        %v2233 = vadd.f32 %v1919, %v2232
        %2234 = vmatprep.mubr.bf16.mxu0 %v1871
        %2235 = vmatmul.mubr.bf16.gmra.mrb[0].mxu0 %v1870
        %v2236 = vpop.f32.mrb[0].mxu0
        %v2237 = vadd.f32 %v1915, %v2236
        %v2238 = vpop.f32.mrb[0].mxu0
        %v2239 = vadd.f32 %v1919, %v2238
        %v2240 = vpop.f32.mrb[0].mxu0
        %v2241 = vadd.f32 %v1915, %v2240
        %v2242 = vpop.f32.mrb[0].mxu0
        %v2243 = vadd.f32 %v1919, %v2242
        %2244 = vmatprep.mubr.bf16.mxu0 %v1873
        %2245 = vmatmul.mubr.bf16.gmra.mrb[0].mxu0 %v1872
        %v2246 = vpop.f32.mrb[0].mxu0
        %v2247 = vadd.f32 %v1915, %v2246
        %v2248 = vpop.f32.mrb[0].mxu0
        %v2249 = vadd.f32 %v1919, %v2248
        %v2250 = vpop.f32.mrb[0].mxu0
        %v2251 = vadd.f32 %v1915, %v2250
        %v2252 = vpop.f32.mrb[0].mxu0
        %v2253 = vadd.f32 %v1919, %v2252
        %2254 = vmatprep.mubr.bf16.mxu0 %v1875
        %2255 = vmatmul.mubr.bf16.gmra.mrb[0].mxu0 %v1874
        %v2256 = vpop.f32.mrb[0].mxu0
        %v2257 = vadd.f32 %v1915, %v2256
        %v2258 = vpop.f32.mrb[0].mxu0
        %v2259 = vadd.f32 %v1919, %v2258
        %v2260 = vpop.f32.mrb[0].mxu0
        %v2261 = vadd.f32 %v1915, %v2260
        %v2262 = vpop.f32.mrb[0].mxu0
        %v2263 = vadd.f32 %v1919, %v2262
        %2264 = vmatprep.mubr.bf16.mxu0 %v1877
        %2265 = vmatmul.mubr.bf16.gmra.mrb[0].mxu0 %v1876
        %v2266 = vpop.f32.mrb[0].mxu0
        %v2267 = vadd.f32 %v1915, %v2266
        %v2268 = vpop.f32.mrb[0].mxu0
        %v2269 = vadd.f32 %v1919, %v2268
        %v2270 = vpop.f32.mrb[0].mxu0
        %v2271 = vadd.f32 %v1915, %v2270
        %v2272 = vpop.f32.mrb[0].mxu0
        %v2273 = vadd.f32 %v1919, %v2272
        %2274 = vdwg.mxu0
        %v2275 = vxor.u32 %v2117, 2147483648
        %v2276 = vxor.u32 %v2119, 2147483648
        %v2277 = vxor.u32 %v2121, 2147483648
        %v2278 = vxor.u32 %v2123, 2147483648
        %v2279 = vxor.u32 %v2127, 2147483648
        %v2280 = vxor.u32 %v2129, 2147483648
        %v2281 = vxor.u32 %v2131, 2147483648
        %v2282 = vxor.u32 %v2133, 2147483648
        %v2283 = vxor.u32 %v2137, 2147483648
        %v2284 = vxor.u32 %v2139, 2147483648
        %v2285 = vxor.u32 %v2141, 2147483648
        %v2286 = vxor.u32 %v2143, 2147483648
        %v2287 = vxor.u32 %v2147, 2147483648
        %v2288 = vxor.u32 %v2149, 2147483648
        %v2289 = vxor.u32 %v2151, 2147483648
        %v2290 = vxor.u32 %v2153, 2147483648
        %v2291 = vxor.u32 %v2157, 2147483648
        %v2292 = vxor.u32 %v2159, 2147483648
        %v2293 = vxor.u32 %v2161, 2147483648
        %v2294 = vxor.u32 %v2163, 2147483648
        %v2295 = vxor.u32 %v2167, 2147483648
        %v2296 = vxor.u32 %v2169, 2147483648
        %v2297 = vxor.u32 %v2171, 2147483648
        %v2298 = vxor.u32 %v2173, 2147483648
        %v2299 = vxor.u32 %v2177, 2147483648
        %v2300 = vxor.u32 %v2179, 2147483648
        %v2301 = vxor.u32 %v2181, 2147483648
        %v2302 = vxor.u32 %v2183, 2147483648
        %v2303 = vxor.u32 %v2187, 2147483648
        %v2304 = vxor.u32 %v2189, 2147483648
        %v2305 = vxor.u32 %v2191, 2147483648
        %v2306 = vxor.u32 %v2193, 2147483648
        %v2307 = vxor.u32 %v2197, 2147483648
        %v2308 = vxor.u32 %v2199, 2147483648
        %v2309 = vxor.u32 %v2201, 2147483648
        %v2310 = vxor.u32 %v2203, 2147483648
        %v2311 = vxor.u32 %v2207, 2147483648
        %v2312 = vxor.u32 %v2209, 2147483648
        %v2313 = vxor.u32 %v2211, 2147483648
        %v2314 = vxor.u32 %v2213, 2147483648
        %v2315 = vxor.u32 %v2217, 2147483648
        %v2316 = vxor.u32 %v2219, 2147483648
        %v2317 = vxor.u32 %v2221, 2147483648
        %v2318 = vxor.u32 %v2223, 2147483648
        %v2319 = vxor.u32 %v2227, 2147483648
        %v2320 = vxor.u32 %v2229, 2147483648
        %v2321 = vxor.u32 %v2231, 2147483648
        %v2322 = vxor.u32 %v2233, 2147483648
        %v2323 = vxor.u32 %v2237, 2147483648
        %v2324 = vxor.u32 %v2239, 2147483648
        %v2325 = vxor.u32 %v2241, 2147483648
        %v2326 = vxor.u32 %v2243, 2147483648
        %v2327 = vxor.u32 %v2247, 2147483648
        %v2328 = vxor.u32 %v2249, 2147483648
        %v2329 = vxor.u32 %v2251, 2147483648
        %v2330 = vxor.u32 %v2253, 2147483648
        %v2331 = vxor.u32 %v2257, 2147483648
        %v2332 = vxor.u32 %v2259, 2147483648
        %v2333 = vxor.u32 %v2261, 2147483648
        %v2334 = vxor.u32 %v2263, 2147483648
        %v2335 = vxor.u32 %v2267, 2147483648
        %v2336 = vxor.u32 %v2269, 2147483648
        %v2337 = vxor.u32 %v2271, 2147483648
        %v2338 = vxor.u32 %v2273, 2147483648
        %v2339 = vmul.f32 %v2275, 1.442695
        %v2340 = vpow.pop %v2339
        %v2341 = vmul.f32 %v2276, 1.442695
        %v2342 = vpow.pop %v2341
        %v2343 = vmul.f32 %v2277, 1.442695
        %v2344 = vpow.pop %v2343
        %v2345 = vmul.f32 %v2278, 1.442695
        %v2346 = vpow.pop %v2345
        %v2347 = vmul.f32 %v2279, 1.442695
        %v2348 = vpow.pop %v2347
        %v2349 = vmul.f32 %v2280, 1.442695
        %v2350 = vpow.pop %v2349
        %v2351 = vmul.f32 %v2281, 1.442695
        %v2352 = vpow.pop %v2351
        %v2353 = vmul.f32 %v2282, 1.442695
        %v2354 = vpow.pop %v2353
        %v2355 = vmul.f32 %v2283, 1.442695
        %v2356 = vpow.pop %v2355
        %v2357 = vmul.f32 %v2284, 1.442695
        %v2358 = vpow.pop %v2357
        %v2359 = vmul.f32 %v2285, 1.442695
        %v2360 = vpow.pop %v2359
        %v2361 = vmul.f32 %v2286, 1.442695
        %v2362 = vpow.pop %v2361
        %v2363 = vmul.f32 %v2287, 1.442695
        %v2364 = vpow.pop %v2363
        %v2365 = vmul.f32 %v2288, 1.442695
        %v2366 = vpow.pop %v2365
        %v2367 = vmul.f32 %v2289, 1.442695
        %v2368 = vpow.pop %v2367
        %v2369 = vmul.f32 %v2290, 1.442695
        %v2370 = vpow.pop %v2369
        %v2371 = vmul.f32 %v2291, 1.442695
        %v2372 = vpow.pop %v2371
        %v2373 = vmul.f32 %v2292, 1.442695
        %v2374 = vpow.pop %v2373
        %v2375 = vmul.f32 %v2293, 1.442695
        %v2376 = vpow.pop %v2375
        %v2377 = vmul.f32 %v2294, 1.442695
        %v2378 = vpow.pop %v2377
        %v2379 = vmul.f32 %v2295, 1.442695
        %v2380 = vpow.pop %v2379
        %v2381 = vmul.f32 %v2296, 1.442695
        %v2382 = vpow.pop %v2381
        %v2383 = vmul.f32 %v2297, 1.442695
        %v2384 = vpow.pop %v2383
        %v2385 = vmul.f32 %v2298, 1.442695
        %v2386 = vpow.pop %v2385
        %v2387 = vmul.f32 %v2299, 1.442695
        %v2388 = vpow.pop %v2387
        %v2389 = vmul.f32 %v2300, 1.442695
        %v2390 = vpow.pop %v2389
        %v2391 = vmul.f32 %v2301, 1.442695
        %v2392 = vpow.pop %v2391
        %v2393 = vmul.f32 %v2302, 1.442695
        %v2394 = vpow.pop %v2393
        %v2395 = vmul.f32 %v2303, 1.442695
        %v2396 = vpow.pop %v2395
        %v2397 = vmul.f32 %v2304, 1.442695
        %v2398 = vpow.pop %v2397
        %v2399 = vmul.f32 %v2305, 1.442695
        %v2400 = vpow.pop %v2399
        %v2401 = vmul.f32 %v2306, 1.442695
        %v2402 = vpow.pop %v2401
        %v2403 = vmul.f32 %v2307, 1.442695
        %v2404 = vpow.pop %v2403
        %v2405 = vmul.f32 %v2308, 1.442695
        %v2406 = vpow.pop %v2405
        %v2407 = vmul.f32 %v2309, 1.442695
        %v2408 = vpow.pop %v2407
        %v2409 = vmul.f32 %v2310, 1.442695
        %v2410 = vpow.pop %v2409
        %v2411 = vmul.f32 %v2311, 1.442695
        %v2412 = vpow.pop %v2411
        %v2413 = vmul.f32 %v2312, 1.442695
        %v2414 = vpow.pop %v2413
        %v2415 = vmul.f32 %v2313, 1.442695
        %v2416 = vpow.pop %v2415
        %v2417 = vmul.f32 %v2314, 1.442695
        %v2418 = vpow.pop %v2417
        %v2419 = vmul.f32 %v2315, 1.442695
        %v2420 = vpow.pop %v2419
        %v2421 = vmul.f32 %v2316, 1.442695
        %v2422 = vpow.pop %v2421
        %v2423 = vmul.f32 %v2317, 1.442695
        %v2424 = vpow.pop %v2423
        %v2425 = vmul.f32 %v2318, 1.442695
        %v2426 = vpow.pop %v2425
        %v2427 = vmul.f32 %v2319, 1.442695
        %v2428 = vpow.pop %v2427
        %v2429 = vmul.f32 %v2320, 1.442695
        %v2430 = vpow.pop %v2429
        %v2431 = vmul.f32 %v2321, 1.442695
        %v2432 = vpow.pop %v2431
        %v2433 = vmul.f32 %v2322, 1.442695
        %v2434 = vpow.pop %v2433
        %v2435 = vmul.f32 %v2323, 1.442695
        %v2436 = vpow.pop %v2435
        %v2437 = vmul.f32 %v2324, 1.442695
        %v2438 = vpow.pop %v2437
        %v2439 = vmul.f32 %v2325, 1.442695
        %v2440 = vpow.pop %v2439
        %v2441 = vmul.f32 %v2326, 1.442695
        %v2442 = vpow.pop %v2441
        %v2443 = vmul.f32 %v2327, 1.442695
        %v2444 = vpow.pop %v2443
        %v2445 = vmul.f32 %v2328, 1.442695
        %v2446 = vpow.pop %v2445
        %v2447 = vmul.f32 %v2329, 1.442695
        %v2448 = vpow.pop %v2447
        %v2449 = vmul.f32 %v2330, 1.442695
        %v2450 = vpow.pop %v2449
        %v2451 = vmul.f32 %v2331, 1.442695
        %v2452 = vpow.pop %v2451
        %v2453 = vmul.f32 %v2332, 1.442695
        %v2454 = vpow.pop %v2453
        %v2455 = vmul.f32 %v2333, 1.442695
        %v2456 = vpow.pop %v2455
        %v2457 = vmul.f32 %v2334, 1.442695
        %v2458 = vpow.pop %v2457
        %v2459 = vmul.f32 %v2335, 1.442695
        %v2460 = vpow.pop %v2459
        %v2461 = vmul.f32 %v2336, 1.442695
        %v2462 = vpow.pop %v2461
        %v2463 = vmul.f32 %v2337, 1.442695
        %v2464 = vpow.pop %v2463
        %v2465 = vmul.f32 %v2338, 1.442695
        %v2466 = vpow.pop %v2465
        %v2467 = vadd.f32 %v2340, 1.0
        %v2468 = vadd.f32 %v2342, 1.0
        %v2469 = vadd.f32 %v2344, 1.0
        %v2470 = vadd.f32 %v2346, 1.0
        %v2471 = vadd.f32 %v2348, 1.0
        %v2472 = vadd.f32 %v2350, 1.0
        %v2473 = vadd.f32 %v2352, 1.0
        %v2474 = vadd.f32 %v2354, 1.0
        %v2475 = vadd.f32 %v2356, 1.0
        %v2476 = vadd.f32 %v2358, 1.0
        %v2477 = vadd.f32 %v2360, 1.0
        %v2478 = vadd.f32 %v2362, 1.0
        %v2479 = vadd.f32 %v2364, 1.0
        %v2480 = vadd.f32 %v2366, 1.0
        %v2481 = vadd.f32 %v2368, 1.0
        %v2482 = vadd.f32 %v2370, 1.0
        %v2483 = vadd.f32 %v2372, 1.0
        %v2484 = vadd.f32 %v2374, 1.0
        %v2485 = vadd.f32 %v2376, 1.0
        %v2486 = vadd.f32 %v2378, 1.0
        %v2487 = vadd.f32 %v2380, 1.0
        %v2488 = vadd.f32 %v2382, 1.0
        %v2489 = vadd.f32 %v2384, 1.0
        %v2490 = vadd.f32 %v2386, 1.0
        %v2491 = vadd.f32 %v2388, 1.0
        %v2492 = vadd.f32 %v2390, 1.0
        %v2493 = vadd.f32 %v2392, 1.0
        %v2494 = vadd.f32 %v2394, 1.0
        %v2495 = vadd.f32 %v2396, 1.0
        %v2496 = vadd.f32 %v2398, 1.0
        %v2497 = vadd.f32 %v2400, 1.0
        %v2498 = vadd.f32 %v2402, 1.0
        %v2499 = vadd.f32 %v2404, 1.0
        %v2500 = vadd.f32 %v2406, 1.0
        %v2501 = vadd.f32 %v2408, 1.0
        %v2502 = vadd.f32 %v2410, 1.0
        %v2503 = vadd.f32 %v2412, 1.0
        %v2504 = vadd.f32 %v2414, 1.0
        %v2505 = vadd.f32 %v2416, 1.0
        %v2506 = vadd.f32 %v2418, 1.0
        %v2507 = vadd.f32 %v2420, 1.0
        %v2508 = vadd.f32 %v2422, 1.0
        %v2509 = vadd.f32 %v2424, 1.0
        %v2510 = vadd.f32 %v2426, 1.0
        %v2511 = vadd.f32 %v2428, 1.0
        %v2512 = vadd.f32 %v2430, 1.0
        %v2513 = vadd.f32 %v2432, 1.0
        %v2514 = vadd.f32 %v2434, 1.0
        %v2515 = vadd.f32 %v2436, 1.0
        %v2516 = vadd.f32 %v2438, 1.0
        %v2517 = vadd.f32 %v2440, 1.0
        %v2518 = vadd.f32 %v2442, 1.0
        %v2519 = vadd.f32 %v2444, 1.0
        %v2520 = vadd.f32 %v2446, 1.0
        %v2521 = vadd.f32 %v2448, 1.0
        %v2522 = vadd.f32 %v2450, 1.0
        %v2523 = vadd.f32 %v2452, 1.0
        %v2524 = vadd.f32 %v2454, 1.0
        %v2525 = vadd.f32 %v2456, 1.0
        %v2526 = vadd.f32 %v2458, 1.0
        %v2527 = vadd.f32 %v2460, 1.0
        %v2528 = vadd.f32 %v2462, 1.0
        %v2529 = vadd.f32 %v2464, 1.0
        %v2530 = vadd.f32 %v2466, 1.0
        %v2531 = vrcp.pop %v2467
        %v2532 = vmul.f32 1.0, %v2531
        %v2533 = vrcp.pop %v2468
        %v2534 = vmul.f32 1.0, %v2533
        %v2535 = vrcp.pop %v2469
        %v2536 = vmul.f32 1.0, %v2535
        %v2537 = vrcp.pop %v2470
        %v2538 = vmul.f32 1.0, %v2537
        %v2539 = vrcp.pop %v2471
        %v2540 = vmul.f32 1.0, %v2539
        %v2541 = vrcp.pop %v2472
        %v2542 = vmul.f32 1.0, %v2541
        %v2543 = vrcp.pop %v2473
        %v2544 = vmul.f32 1.0, %v2543
        %v2545 = vrcp.pop %v2474
        %v2546 = vmul.f32 1.0, %v2545
        %v2547 = vrcp.pop %v2475
        %v2548 = vmul.f32 1.0, %v2547
        %v2549 = vrcp.pop %v2476
        %v2550 = vmul.f32 1.0, %v2549
        %v2551 = vrcp.pop %v2477
        %v2552 = vmul.f32 1.0, %v2551
        %v2553 = vrcp.pop %v2478
        %v2554 = vmul.f32 1.0, %v2553
        %v2555 = vrcp.pop %v2479
        %v2556 = vmul.f32 1.0, %v2555
        %v2557 = vrcp.pop %v2480
        %v2558 = vmul.f32 1.0, %v2557
        %v2559 = vrcp.pop %v2481
        %v2560 = vmul.f32 1.0, %v2559
        %v2561 = vrcp.pop %v2482
        %v2562 = vmul.f32 1.0, %v2561
        %v2563 = vrcp.pop %v2483
        %v2564 = vmul.f32 1.0, %v2563
        %v2565 = vrcp.pop %v2484
        %v2566 = vmul.f32 1.0, %v2565
        %v2567 = vrcp.pop %v2485
        %v2568 = vmul.f32 1.0, %v2567
        %v2569 = vrcp.pop %v2486
        %v2570 = vmul.f32 1.0, %v2569
        %v2571 = vrcp.pop %v2487
        %v2572 = vmul.f32 1.0, %v2571
        %v2573 = vrcp.pop %v2488
        %v2574 = vmul.f32 1.0, %v2573
        %v2575 = vrcp.pop %v2489
        %v2576 = vmul.f32 1.0, %v2575
        %v2577 = vrcp.pop %v2490
        %v2578 = vmul.f32 1.0, %v2577
        %v2579 = vrcp.pop %v2491
        %v2580 = vmul.f32 1.0, %v2579
        %v2581 = vrcp.pop %v2492
        %v2582 = vmul.f32 1.0, %v2581
        %v2583 = vrcp.pop %v2493
        %v2584 = vmul.f32 1.0, %v2583
        %v2585 = vrcp.pop %v2494
        %v2586 = vmul.f32 1.0, %v2585
        %v2587 = vrcp.pop %v2495
        %v2588 = vmul.f32 1.0, %v2587
        %v2589 = vrcp.pop %v2496
        %v2590 = vmul.f32 1.0, %v2589
        %v2591 = vrcp.pop %v2497
        %v2592 = vmul.f32 1.0, %v2591
        %v2593 = vrcp.pop %v2498
        %v2594 = vmul.f32 1.0, %v2593
        %v2595 = vrcp.pop %v2499
        %v2596 = vmul.f32 1.0, %v2595
        %v2597 = vrcp.pop %v2500
        %v2598 = vmul.f32 1.0, %v2597
        %v2599 = vrcp.pop %v2501
        %v2600 = vmul.f32 1.0, %v2599
        %v2601 = vrcp.pop %v2502
        %v2602 = vmul.f32 1.0, %v2601
        %v2603 = vrcp.pop %v2503
        %v2604 = vmul.f32 1.0, %v2603
        %v2605 = vrcp.pop %v2504
        %v2606 = vmul.f32 1.0, %v2605
        %v2607 = vrcp.pop %v2505
        %v2608 = vmul.f32 1.0, %v2607
        %v2609 = vrcp.pop %v2506
        %v2610 = vmul.f32 1.0, %v2609
        %v2611 = vrcp.pop %v2507
        %v2612 = vmul.f32 1.0, %v2611
        %v2613 = vrcp.pop %v2508
        %v2614 = vmul.f32 1.0, %v2613
        %v2615 = vrcp.pop %v2509
        %v2616 = vmul.f32 1.0, %v2615
        %v2617 = vrcp.pop %v2510
        %v2618 = vmul.f32 1.0, %v2617
        %v2619 = vrcp.pop %v2511
        %v2620 = vmul.f32 1.0, %v2619
        %v2621 = vrcp.pop %v2512
        %v2622 = vmul.f32 1.0, %v2621
        %v2623 = vrcp.pop %v2513
        %v2624 = vmul.f32 1.0, %v2623
        %v2625 = vrcp.pop %v2514
        %v2626 = vmul.f32 1.0, %v2625
        %v2627 = vrcp.pop %v2515
        %v2628 = vmul.f32 1.0, %v2627
        %v2629 = vrcp.pop %v2516
        %v2630 = vmul.f32 1.0, %v2629
        %v2631 = vrcp.pop %v2517
        %v2632 = vmul.f32 1.0, %v2631
        %v2633 = vrcp.pop %v2518
        %v2634 = vmul.f32 1.0, %v2633
        %v2635 = vrcp.pop %v2519
        %v2636 = vmul.f32 1.0, %v2635
        %v2637 = vrcp.pop %v2520
        %v2638 = vmul.f32 1.0, %v2637
        %v2639 = vrcp.pop %v2521
        %v2640 = vmul.f32 1.0, %v2639
        %v2641 = vrcp.pop %v2522
        %v2642 = vmul.f32 1.0, %v2641
        %v2643 = vrcp.pop %v2523
        %v2644 = vmul.f32 1.0, %v2643
        %v2645 = vrcp.pop %v2524
        %v2646 = vmul.f32 1.0, %v2645
        %v2647 = vrcp.pop %v2525
        %v2648 = vmul.f32 1.0, %v2647
        %v2649 = vrcp.pop %v2526
        %v2650 = vmul.f32 1.0, %v2649
        %v2651 = vrcp.pop %v2527
        %v2652 = vmul.f32 1.0, %v2651
        %v2653 = vrcp.pop %v2528
        %v2654 = vmul.f32 1.0, %v2653
        %v2655 = vrcp.pop %v2529
        %v2656 = vmul.f32 1.0, %v2655
        %v2657 = vrcp.pop %v2530
        %v2658 = vmul.f32 1.0, %v2657
        %2659 = vst [vmem:[%s447] sm:$0xff] %v2532
        %2660 = vst [vmem:[%s447 + $0x8] sm:$0xff] %v2534
        %2661 = vst [vmem:[%s447 + $0x10] sm:$0xff] %v2536
        %2662 = vst [vmem:[%s447 + $0x18] sm:$0xff] %v2538
        %2663 = vst [vmem:[%s447 + $0x20] sm:$0xff] %v2540
        %2664 = vst [vmem:[%s447 + $0x28] sm:$0xff] %v2542
        %2665 = vst [vmem:[%s447 + $0x30] sm:$0xff] %v2544
        %2666 = vst [vmem:[%s447 + $0x38] sm:$0xff] %v2546
        %2667 = vst [vmem:[%s447 + $0x40] sm:$0xff] %v2548
        %2668 = vst [vmem:[%s447 + $0x48] sm:$0xff] %v2550
        %2669 = vst [vmem:[%s447 + $0x50] sm:$0xff] %v2552
        %2670 = vst [vmem:[%s447 + $0x58] sm:$0xff] %v2554
        %2671 = vst [vmem:[%s447 + $0x60] sm:$0xff] %v2556
        %2672 = vst [vmem:[%s447 + $0x68] sm:$0xff] %v2558
        %2673 = vst [vmem:[%s447 + $0x70] sm:$0xff] %v2560
        %2674 = vst [vmem:[%s447 + $0x78] sm:$0xff] %v2562
        %2675 = vst [vmem:[%s447 + $0x80] sm:$0xff] %v2564
        %2676 = vst [vmem:[%s447 + $0x88] sm:$0xff] %v2566
        %2677 = vst [vmem:[%s447 + $0x90] sm:$0xff] %v2568
        %2678 = vst [vmem:[%s447 + $0x98] sm:$0xff] %v2570
        %2679 = vst [vmem:[%s447 + $0xa0] sm:$0xff] %v2572
        %2680 = vst [vmem:[%s447 + $0xa8] sm:$0xff] %v2574
        %2681 = vst [vmem:[%s447 + $0xb0] sm:$0xff] %v2576
        %2682 = vst [vmem:[%s447 + $0xb8] sm:$0xff] %v2578
        %2683 = vst [vmem:[%s447 + $0xc0] sm:$0xff] %v2580
        %2684 = vst [vmem:[%s447 + $0xc8] sm:$0xff] %v2582
        %2685 = vst [vmem:[%s447 + $0xd0] sm:$0xff] %v2584
        %2686 = vst [vmem:[%s447 + $0xd8] sm:$0xff] %v2586
        %2687 = vst [vmem:[%s447 + $0xe0] sm:$0xff] %v2588
        %2688 = vst [vmem:[%s447 + $0xe8] sm:$0xff] %v2590
        %2689 = vst [vmem:[%s447 + $0xf0] sm:$0xff] %v2592
        %2690 = vst [vmem:[%s447 + $0xf8] sm:$0xff] %v2594
        %2691 = vst [vmem:[%s447 + $0x100] sm:$0xff] %v2596
        %2692 = vst [vmem:[%s447 + $0x108] sm:$0xff] %v2598
        %2693 = vst [vmem:[%s447 + $0x110] sm:$0xff] %v2600
        %2694 = vst [vmem:[%s447 + $0x118] sm:$0xff] %v2602
        %2695 = vst [vmem:[%s447 + $0x120] sm:$0xff] %v2604
        %2696 = vst [vmem:[%s447 + $0x128] sm:$0xff] %v2606
        %2697 = vst [vmem:[%s447 + $0x130] sm:$0xff] %v2608
        %2698 = vst [vmem:[%s447 + $0x138] sm:$0xff] %v2610
        %2699 = vst [vmem:[%s447 + $0x140] sm:$0xff] %v2612
        %2700 = vst [vmem:[%s447 + $0x148] sm:$0xff] %v2614
        %2701 = vst [vmem:[%s447 + $0x150] sm:$0xff] %v2616
        %2702 = vst [vmem:[%s447 + $0x158] sm:$0xff] %v2618
        %2703 = vst [vmem:[%s447 + $0x160] sm:$0xff] %v2620
        %2704 = vst [vmem:[%s447 + $0x168] sm:$0xff] %v2622
        %2705 = vst [vmem:[%s447 + $0x170] sm:$0xff] %v2624
        %2706 = vst [vmem:[%s447 + $0x178] sm:$0xff] %v2626
        %2707 = vst [vmem:[%s447 + $0x180] sm:$0xff] %v2628
        %2708 = vst [vmem:[%s447 + $0x188] sm:$0xff] %v2630
        %2709 = vst [vmem:[%s447 + $0x190] sm:$0xff] %v2632
        %2710 = vst [vmem:[%s447 + $0x198] sm:$0xff] %v2634
        %2711 = vst [vmem:[%s447 + $0x1a0] sm:$0xff] %v2636
        %2712 = vst [vmem:[%s447 + $0x1a8] sm:$0xff] %v2638
        %2713 = vst [vmem:[%s447 + $0x1b0] sm:$0xff] %v2640
        %2714 = vst [vmem:[%s447 + $0x1b8] sm:$0xff] %v2642
        %2715 = vst [vmem:[%s447 + $0x1c0] sm:$0xff] %v2644
        %2716 = vst [vmem:[%s447 + $0x1c8] sm:$0xff] %v2646
        %2717 = vst [vmem:[%s447 + $0x1d0] sm:$0xff] %v2648
        %2718 = vst [vmem:[%s447 + $0x1d8] sm:$0xff] %v2650
        %2719 = vst [vmem:[%s447 + $0x1e0] sm:$0xff] %v2652
        %2720 = vst [vmem:[%s447 + $0x1e8] sm:$0xff] %v2654
        %2721 = vst [vmem:[%s447 + $0x1f0] sm:$0xff] %v2656
        %2722 = vst [vmem:[%s447 + $0x1f8] sm:$0xff] %v2658
        %s2723 = sand.u32 %s235, 1
        %s2724 = scalar_lea.sflag [#allocation4], %s2723
        %s2725 = sand.u32 %s235, 1
        %s2726 = smul.addr %s2725, 256
        %s2727 = scalar_lea.vmem [#allocation11], %s2726
        %s2728 = sand.u32 %s261, 1
        %s2729 = scalar_lea.sflag [#allocation13], %s2728
        %s2730 = sand.u32 %s261, 1
        %s2731 = smul.addr %s2730, 512
        %s2732 = scalar_lea.vmem [#allocation12], %s2731
        // Predicated region
        $region77: #{tpu_custom_call.1} parent=55 // pred_check
          %p2733 = pneg %p245
        $region78: #{tpu_custom_call.1} parent=55 // pred_check_branch
          %2735 = sbr.rel (%p2733) target = $region80
        $region79: #{tpu_custom_call.1} parent=55 // pred_region
          %s2736 = smul.u32 32, %s33
          %s2738 = ssub.s32 4096, 4096
          %2739 = vsyncadd %s2724, %s2738
          %s2740 = smul.addr %s2736, 128
          %s2741 = scalar_lea.hbm %s9, %s2740
          %s2742 = sshll.u32 %s2727, 4
          %s2743 = int_to_ptr.vmem [resolvable:$true] %s2742
          %2748 = dma.vmem_to_hbm [thread:$0]  %s2743, 4096, %s2741, %s2724, 128, 128, 8
        $region80: #{tpu_custom_call.1} parent=55 // pred_fallthru
          _
        // Predicated region
        $region81: #{tpu_custom_call.1} parent=55 // pred_check
          %p2749 = pneg %p271
        $region82: #{tpu_custom_call.1} parent=55 // pred_check_branch
          %2751 = sbr.rel (%p2749) target = $region84
        $region83: #{tpu_custom_call.1} parent=55 // pred_region
          %s2752 = smul.u32 32, %s33
          %s2754 = ssub.s32 8192, 8192
          %2755 = vsyncadd %s2729, %s2754
          %s2756 = smul.addr %s2752, 2
          %s2757 = smul.addr %s2756, 128
          %s2758 = scalar_lea.hbm %s10, %s2757
          %s2759 = sshll.u32 %s2732, 4
          %s2760 = int_to_ptr.vmem [resolvable:$true] %s2759
          %2765 = dma.vmem_to_hbm [thread:$0]  %s2760, 8192, %s2758, %s2729, 256, 256, 16
        $region84: #{tpu_custom_call.1} parent=55 // pred_fallthru
          _
      $region56: #{tpu_custom_call.1} parent=5 // pred_fallthru
        _
      %p2766 = scmp.le.s32.totalorder 2, %s28
      // Predicated region
      $region85: #{tpu_custom_call.1} parent=5 // pred_check
        %p2767 = pneg %p2766
      $region86: #{tpu_custom_call.1} parent=5 // pred_check_branch
        %2769 = sbr.rel (%p2767) target = $region88
      $region87: #{tpu_custom_call.1} parent=5 // pred_region
        %s2770 = ssub.s32 %s28, 2
        // Predicated region
        $region89: #{tpu_custom_call.1} parent=87 // pred_check
          %p2771 = pneg %p251
        $region90: #{tpu_custom_call.1} parent=87 // pred_check_branch
          %2773 = sbr.rel (%p2771) target = $region92
        $region91: #{tpu_custom_call.1} parent=87 // pred_region
          %s2774 = sand.u32 %s236, 1
          %s2775 = scalar_lea.sflag [#allocation4], %s2774
          %s2776 = sand.u32 %s236, 1
          %s2777 = smul.addr %s2776, 256
          %s2778 = scalar_lea.vmem [#allocation11], %s2777
          %2779 = dma.done %s2775, 4096
        $region92: #{tpu_custom_call.1} parent=87 // pred_fallthru
          _
        // Predicated region
        $region93: #{tpu_custom_call.1} parent=87 // pred_check
          %p2780 = pneg %p277
        $region94: #{tpu_custom_call.1} parent=87 // pred_check_branch
          %2782 = sbr.rel (%p2780) target = $region96
        $region95: #{tpu_custom_call.1} parent=87 // pred_region
          %s2783 = sand.u32 %s262, 1
          %s2784 = scalar_lea.sflag [#allocation13], %s2783
          %s2785 = sand.u32 %s262, 1
          %s2786 = smul.addr %s2785, 512
          %s2787 = scalar_lea.vmem [#allocation12], %s2786
          %2788 = dma.done %s2784, 8192
        $region96: #{tpu_custom_call.1} parent=87 // pred_fallthru
          _
      $region88: #{tpu_custom_call.1} parent=5 // pred_fallthru
        _
    $region6: #{tpu_custom_call.1} parent=1 // loop_footer
      %s32 = sadd.s32 1, %s28
    $region7: #{tpu_custom_call.1} parent=1 // loop_footer_branch
      %27 = sbr.rel target = $region3
    $region8: #{tpu_custom_call.1} parent=1 // loop_exit
      _
    %2789 = vsyncpa [#allocation3], 1
    %s2790 = scalar_lea.sflag [#allocation3], 1
    %2791 = vsyncpa %s2790, 1
    %2792 = vsyncpa [#allocation6], 1
    %2793 = vsyncpa [#allocation9], 1
    %2794 = vsyncpa [#allocation4], 1
    %s2795 = scalar_lea.sflag [#allocation4], 1
    %2796 = vsyncpa %s2795, 1
    %2797 = vsyncpa [#allocation13], 1
    %s2798 = scalar_lea.sflag [#allocation13], 1
    %2799 = vsyncpa %s2798, 1

</llo_original>
